<compile_context>
chip_gen: v6e
topology: v6e:2x2x1
jax: 0.10.0
libtpu: 0.0.40
codegen_flags: <defaults>
</compile_context>

<pallas_src>
import jax
import jax.numpy as jnp
from jax.experimental import pallas as pl
from jax.experimental.pallas import tpu as pltpu


# Matmul operand dtype.  float32 gives bit-level parity with the reference;
# set to jnp.bfloat16 on v6e/v7x for full-rate MXU (accumulation stays f32,
# gate math stays f32 so v5e's VPU/EUP path is unaffected either way).
MATMUL_DTYPE = jnp.float32


# ----------------------------------------------------------------------------
# Pallas kernel: one GRU branch per grid step (grid=(2,), "parallel")
# ----------------------------------------------------------------------------

def gru_branch_kernel(x_ref, sm_ref, wi_ref, wh_ref, bi_ref, bh_ref, out_ref):
    # x_ref  : (T*Bp, E)   time-major embedded inputs, batch-padded, flattened
    # sm_ref : (Bp, T)     sel weight: mask[t,b] * (actionNum[b] == t)
    # wi_ref : (E, 3*Hp)   input weights, gate slabs [r | z | n], each Hp lanes
    # wh_ref : (Hp, 3*Hp)  hidden weights, same gate-slab layout
    # bi_ref : (1, 3*Hp)   f32
    # bh_ref : (1, 3*Hp)   f32
    # out_ref: (Bp, Hp)    f32   (masked_output)[b, actionNum[b], :]
    Bp, T = sm_ref.shape
    Hp = wh_ref.shape[0]

    wh = wh_ref[...]
    bh = bh_ref[...]
    sm = sm_ref[...]                                                   # (Bp, T)

    # Hoisted input projection: one large MXU matmul for every time step.
    gi_all = jnp.dot(x_ref[...], wi_ref[...],
                     preferred_element_type=jnp.float32) + bi_ref[...]  # (T*Bp, 3Hp)

    h = jnp.zeros((Bp, Hp), jnp.float32)
    acc = jnp.zeros((Bp, Hp), jnp.float32)

    # Statically unrolled recurrence (T is small & static) — gives the LLO
    # scheduler cross-iteration visibility over MXU / EUP / VPU work.
    for t in range(T):
        gi = gi_all[t * Bp:(t + 1) * Bp, :]                            # (Bp, 3Hp)
        gh = jnp.dot(h.astype(wh.dtype), wh,
                     preferred_element_type=jnp.float32) + bh          # (Bp, 3Hp)
        r = jax.nn.sigmoid(gi[:, :Hp] + gh[:, :Hp])
        z = jax.nn.sigmoid(gi[:, Hp:2 * Hp] + gh[:, Hp:2 * Hp])
        n = jnp.tanh(gi[:, 2 * Hp:] + r * gh[:, 2 * Hp:])
        h = (1.0 - z) * n + z * h
        # fused mask-multiply + output[b, actionNum[b], :] gather
        acc = acc + sm[:, t:t + 1] * h

    out_ref[...] = acc


def gru_two_branch(x2, sm2, wi2, wh2, bi2, bh2):
    # x2 : (2, T*Bp, E)   sm2: (2, Bp, T)   wi2: (2, E, 3Hp)
    # wh2: (2, Hp, 3Hp)   bi2/bh2: (2, 1, 3Hp)
    nb, TB, E = x2.shape
    _, Bp, T = sm2.shape
    Hp = wh2.shape[1]
    bmap = lambda g: (g, 0, 0)
    return pl.pallas_call(
        gru_branch_kernel,
        out_shape=jax.ShapeDtypeStruct((nb, Bp, Hp), jnp.float32),
        grid=(nb,),
        in_specs=[
            pl.BlockSpec((None, TB, E), bmap),
            pl.BlockSpec((None, Bp, T), bmap),
            pl.BlockSpec((None, E, 3 * Hp), bmap),
            pl.BlockSpec((None, Hp, 3 * Hp), bmap),
            pl.BlockSpec((None, 1, 3 * Hp), bmap),
            pl.BlockSpec((None, 1, 3 * Hp), bmap),
        ],
        out_specs=pl.BlockSpec((None, Bp, Hp), bmap),
        compiler_params=pltpu.CompilerParams(
            dimension_semantics=("parallel",)),
    )(x2, sm2, wi2, wh2, bi2, bh2)


# ----------------------------------------------------------------------------
# One-time parameter preparation (transpose / gate-pad / branch-stack weights)
# ----------------------------------------------------------------------------

def _pack_gru(w_ih, w_hh, b_ih, b_hh, Hp):
    # PyTorch GRU layout: rows [r | z | n], each H rows.  Produce lane-aligned
    # gate slabs of width Hp each.
    H = w_hh.shape[1]
    wi_s, wh_s, bi_s, bh_s = [], [], [], []
    for g in range(3):
        wi_g = jnp.transpose(w_ih[g * H:(g + 1) * H, :])               # (E, H)
        wh_g = jnp.transpose(w_hh[g * H:(g + 1) * H, :])               # (H, H)
        wi_s.append(jnp.pad(wi_g, ((0, 0), (0, Hp - H))))
        wh_s.append(jnp.pad(wh_g, ((0, Hp - H), (0, Hp - H))))
        bi_s.append(jnp.pad(b_ih[g * H:(g + 1) * H], (0, Hp - H)))
        bh_s.append(jnp.pad(b_hh[g * H:(g + 1) * H], (0, Hp - H)))
    wi = jnp.concatenate(wi_s, axis=1)                                 # (E, 3Hp)
    wh = jnp.concatenate(wh_s, axis=1)                                 # (Hp, 3Hp)
    bi = jnp.concatenate(bi_s).reshape(1, 3 * Hp)
    bh = jnp.concatenate(bh_s).reshape(1, 3 * Hp)
    return wi, wh, bi, bh


def prepare_itemnn_params(params):
    H = params["w_hh_cate"].shape[1]
    Hp = ((H + 127) // 128) * 128
    wi_c, wh_c, bi_c, bh_c = _pack_gru(params["w_ih_cate"], params["w_hh_cate"],
                                       params["b_ih_cate"], params["b_hh_cate"], Hp)
    wi_s, wh_s, bi_s, bh_s = _pack_gru(params["w_ih_short"], params["w_hh_short"],
                                       params["b_ih_short"], params["b_hh_short"], Hp)
    return dict(
        embedding=params["embedding"],
        H=H, Hp=Hp,
        wi=jnp.stack([wi_c, wi_s]).astype(MATMUL_DTYPE),   # (2, E, 3Hp)
        wh=jnp.stack([wh_c, wh_s]).astype(MATMUL_DTYPE),   # (2, Hp, 3Hp)
        bi=jnp.stack([bi_c, bi_s]).astype(jnp.float32),    # (2, 1, 3Hp)
        bh=jnp.stack([bh_c, bh_s]).astype(jnp.float32),    # (2, 1, 3Hp)
    )


# ----------------------------------------------------------------------------
# ITEMNN forward (Pallas version)
# ----------------------------------------------------------------------------

def itemnn_forward(prep,
                   action_cate_long_batch, cate_long_batch,
                   action_cate_mask_long_batch, actionNum_cate_long_batch,
                   action_short_batch, action_mask_short_batch,
                   actionNum_short_batch, y_cate_batch):
    # Unused torch args (cate_mask_long_batch, max_* counts, cateNum_long_batch,
    # train_test_flag) do not affect the forward output and are not plumbed.
    emb = prep["embedding"]
    H, Hp = prep["H"], prep["Hp"]
    E = emb.shape[1]
    B = y_cate_batch.shape[0]
    T_long = action_cate_long_batch.shape[-1]
    T_short = action_short_batch.shape[-1]
    Tmax = max(T_long, T_short)
    Bp = ((B + 7) // 8) * 8

    # ---- category selection: tiny one-hot reduce, plain jnp, int-exact ----
    y = y_cate_batch.reshape(B, 1)
    onehot_i = (cate_long_batch == y).astype(jnp.int32)                # (B, C)
    onehot_f = onehot_i.astype(jnp.float32)
    act = action_cate_long_batch.reshape(B, -1, T_long).astype(jnp.int32)
    act_sel = jnp.sum(act * onehot_i[:, :, None], axis=1)              # (B, T) ids
    amask = action_cate_mask_long_batch.reshape(B, -1, T_long).astype(jnp.float32)
    mask_sel = jnp.sum(amask * onehot_f[:, :, None], axis=1)           # (B, T)
    num = actionNum_cate_long_batch.reshape(B, -1).astype(jnp.int32)
    num_sel = jnp.sum(num * onehot_i, axis=1)                          # (B,)

    # ---- time-major embeddings (gather with the transposed id matrix) ----
    x_long = jnp.take(emb, act_sel.T, axis=0)                          # (Tl, B, E)
    x_short = jnp.take(emb, action_short_batch.astype(jnp.int32).T, axis=0)

    # ---- fused (mask * one-hot-of-actionNum) selection weights, (B, T) ----
    # NOTE: if actionNum >= T the selection is all-zero (torch fancy-indexing
    # would clamp/error); identical to the previous kernel's behavior.
    sel_long = mask_sel * (num_sel[:, None] ==
                           jnp.arange(T_long)[None, :]).astype(jnp.float32)
    sel_short = (action_mask_short_batch.astype(jnp.float32) *
                 (actionNum_short_batch.astype(jnp.int32)[:, None] ==
                  jnp.arange(T_short)[None, :]).astype(jnp.float32))

    # ---- pad to (Tmax, Bp) and stack the two branches ----
    def pad_x(x, T):
        x = jnp.pad(x, ((0, Tmax - T), (0, Bp - B), (0, 0)))
        return x.reshape(Tmax * Bp, E).astype(MATMUL_DTYPE)

    def pad_sel(sm, T):
        return jnp.pad(sm, ((0, Bp - B), (0, Tmax - T)))

    x2 = jnp.stack([pad_x(x_long, T_long), pad_x(x_short, T_short)])       # (2, Tmax*Bp, E)
    sm2 = jnp.stack([pad_sel(sel_long, T_long), pad_sel(sel_short, T_short)])  # (2, Bp, Tmax)

    out2 = gru_two_branch(x2, sm2, prep["wi"], prep["wh"], prep["bi"], prep["bh"])
    return out2[0, :B, :H], out2[1, :B, :H]


# ----------------------------------------------------------------------------
# Pure-JAX reference (mirrors the torch forward) for verification
# ----------------------------------------------------------------------------

def gru_ref(x, w_ih, w_hh, b_ih, b_hh):
    H = w_hh.shape[1]

    def step(h, x_t):
        gi = x_t @ w_ih.T + b_ih
        gh = h @ w_hh.T + b_hh
        r = jax.nn.sigmoid(gi[:, :H] + gh[:, :H])
        z = jax.nn.sigmoid(gi[:, H:2 * H] + gh[:, H:2 * H])
        n = jnp.tanh(gi[:, 2 * H:] + r * gh[:, 2 * H:])
        h_new = (1.0 - z) * n + z * h
        return h_new, h_new

    h0 = jnp.zeros((x.shape[0], H), jnp.float32)
    _, outs = jax.lax.scan(step, h0, jnp.swapaxes(x, 0, 1))
    return jnp.swapaxes(outs, 0, 1)


def itemnn_ref(params,
               action_cate_long_batch, cate_long_batch,
               action_cate_mask_long_batch, actionNum_cate_long_batch,
               action_short_batch, action_mask_short_batch,
               actionNum_short_batch, y_cate_batch):
    emb = params["embedding"]
    B = y_cate_batch.shape[0]
    T_long = action_cate_long_batch.shape[-1]

    y = y_cate_batch.reshape(-1, 1)
    yidx = (cate_long_batch == y).astype(jnp.float32)[:, :, None]      # (B, C, 1)

    act = action_cate_long_batch.reshape(B, -1, T_long)
    act_sel = jnp.sum(act * yidx.astype(act.dtype), axis=1)            # (B, T)
    x = jnp.take(emb, act_sel.astype(jnp.int32), axis=0)
    out = gru_ref(x, params["w_ih_cate"], params["w_hh_cate"],
                  params["b_ih_cate"], params["b_hh_cate"])            # (B, T, H)
    amask = action_cate_mask_long_batch.reshape(B, -1, T_long).astype(jnp.float32)
    mask_sel = jnp.sum(amask * yidx, axis=1)[:, :, None]               # (B, T, 1)
    out_mask = out * mask_sel
    num = actionNum_cate_long_batch.reshape(B, -1)
    num_sel = jnp.sum(num * yidx[:, :, 0].astype(num.dtype), axis=1)
    seq_cate = out_mask[jnp.arange(B), num_sel, :]

    xs = jnp.take(emb, action_short_batch.astype(jnp.int32), axis=0)
    outs = gru_ref(xs, params["w_ih_short"], params["w_hh_short"],
                   params["b_ih_short"], params["b_hh_short"])
    outs_mask = outs * action_mask_short_batch.astype(jnp.float32)[:, :, None]
    seq_short = outs_mask[jnp.arange(B), actionNum_short_batch, :]
    return seq_cate, seq_short


# ----------------------------------------------------------------------------
# Deterministic parameter init (shapes from ITEMNN.__init__)
# ----------------------------------------------------------------------------

def init_params(key, vocab, E, H):
    ks = jax.random.split(key, 9)
    stdv = 1.0 / (H ** 0.5)
    u = lambda k, shape: jax.random.uniform(k, shape, jnp.float32, -stdv, stdv)
    return dict(
        embedding=jax.random.normal(ks[0], (vocab, E), jnp.float32),
        # m_cate_session_gru (single layer)
        w_ih_cate=u(ks[1], (3 * H, E)), w_hh_cate=u(ks[2], (3 * H, H)),
        b_ih_cate=u(ks[3], (3 * H,)), b_hh_cate=u(ks[4], (3 * H,)),
        # m_short_gru (single layer)
        w_ih_short=u(ks[5], (3 * H, E)), w_hh_short=u(ks[6], (3 * H, H)),
        b_ih_short=u(ks[7], (3 * H,)), b_hh_short=u(ks[8], (3 * H,)),
    )


if __name__ == "__main__":
    B, C, T_long, T_short = 4, 4, 8, 6
    vocab, E, H = 50, 32, 32

    key = jax.random.PRNGKey(0)
    kp, kd = jax.random.split(key)
    params = init_params(kp, vocab, E, H)
    prep = prepare_itemnn_params(params)      # one-time weight packing

    kk = jax.random.split(kd, 8)
    y_cate_batch = jax.random.randint(kk[0], (B,), 0, C)
    cate_long_batch = jnp.tile(jnp.arange(C, dtype=jnp.int32), (B, 1))     # (B, C)
    action_cate_long_batch = jax.random.randint(kk[1], (B * C, T_long), 1, vocab)
    action_cate_mask_long_batch = jax.random.bernoulli(
        kk[2], 0.8, (B * C, T_long)).astype(jnp.float32)
    actionNum_cate_long_batch = jax.random.randint(kk[3], (B * C,), 0, T_long)
    action_short_batch = jax.random.randint(kk[4], (B, T_short), 1, vocab)
    action_mask_short_batch = jax.random.bernoulli(
        kk[5], 0.8, (B, T_short)).astype(jnp.float32)
    actionNum_short_batch = jax.random.randint(kk[6], (B,), 0, T_short)

    seq_cate, seq_short = itemnn_forward(
        prep,
        action_cate_long_batch, cate_long_batch,
        action_cate_mask_long_batch, actionNum_cate_long_batch,
        action_short_batch, action_mask_short_batch,
        actionNum_short_batch, y_cate_batch)
    seq_cate = jax.block_until_ready(seq_cate)
    seq_short = jax.block_until_ready(seq_short)

    ref_cate, ref_short = itemnn_ref(
        params,
        action_cate_long_batch, cate_long_batch,
        action_cate_mask_long_batch, actionNum_cate_long_batch,
        action_short_batch, action_mask_short_batch,
        actionNum_short_batch, y_cate_batch)

    assert seq_cate.shape == (B, H) and seq_short.shape == (B, H)
    assert jnp.allclose(seq_cate, ref_cate, atol=1e-4, rtol=1e-4)
    assert jnp.allclose(seq_short, ref_short, atol=1e-4, rtol=1e-4)

    print("KERNEL_OK")
</pallas_src>

<mosaic_0001>
module attributes {stable_mosaic.version = 11 : i64} {
  func.func @gru_branch_kernel(%arg0: i32, %arg1: memref<1x64x32xf32, #tpu.memory_space<vmem>>, %arg2: memref<1x8x8xf32, #tpu.memory_space<vmem>>, %arg3: memref<1x32x384xf32, #tpu.memory_space<vmem>>, %arg4: memref<1x128x384xf32, #tpu.memory_space<vmem>>, %arg5: memref<1x1x384xf32, #tpu.memory_space<vmem>>, %arg6: memref<1x1x384xf32, #tpu.memory_space<vmem>>, %arg7: memref<1x8x128xf32, #tpu.memory_space<vmem>>) attributes {dimension_semantics = [#tpu.dimension_semantics<parallel>], iteration_bounds = array<i64: 2>, scalar_prefetch = 0 : i64, scratch_operands = 0 : i64, tpu.core_type = #tpu.core_type<tc>, window_params = [{transform_indices = @transform_0, window_bounds = array<i64: 1, 64, 32>}, {transform_indices = @transform_1, window_bounds = array<i64: 1, 8, 8>}, {transform_indices = @transform_2, window_bounds = array<i64: 1, 32, 384>}, {transform_indices = @transform_3, window_bounds = array<i64: 1, 128, 384>}, {transform_indices = @transform_4, window_bounds = array<i64: 1, 1, 384>}, {transform_indices = @transform_5, window_bounds = array<i64: 1, 1, 384>}, {transform_indices = @transform_6, window_bounds = array<i64: 1, 8, 128>}]} {
    %c0 = arith.constant 0 : index
    %c0_0 = arith.constant 0 : index
    %c0_1 = arith.constant 0 : index
    %0 = vector.load %arg4[%c0, %c0_0, %c0_1] : memref<1x128x384xf32, #tpu.memory_space<vmem>>, vector<1x128x384xf32>
    %1 = vector.shape_cast %0 : vector<1x128x384xf32> to vector<128x384xf32>
    %c0_2 = arith.constant 0 : index
    %c0_3 = arith.constant 0 : index
    %c0_4 = arith.constant 0 : index
    %2 = vector.load %arg6[%c0_2, %c0_3, %c0_4] : memref<1x1x384xf32, #tpu.memory_space<vmem>>, vector<1x1x384xf32>
    %3 = vector.shape_cast %2 : vector<1x1x384xf32> to vector<1x384xf32>
    %c0_5 = arith.constant 0 : index
    %c0_6 = arith.constant 0 : index
    %c0_7 = arith.constant 0 : index
    %4 = vector.load %arg2[%c0_5, %c0_6, %c0_7] : memref<1x8x8xf32, #tpu.memory_space<vmem>>, vector<1x8x8xf32>
    %5 = vector.shape_cast %4 : vector<1x8x8xf32> to vector<8x8xf32>
    %c0_8 = arith.constant 0 : index
    %c0_9 = arith.constant 0 : index
    %c0_10 = arith.constant 0 : index
    %6 = vector.load %arg1[%c0_8, %c0_9, %c0_10] : memref<1x64x32xf32, #tpu.memory_space<vmem>>, vector<1x64x32xf32>
    %7 = vector.shape_cast %6 : vector<1x64x32xf32> to vector<64x32xf32>
    %c0_11 = arith.constant 0 : index
    %c0_12 = arith.constant 0 : index
    %c0_13 = arith.constant 0 : index
    %8 = vector.load %arg3[%c0_11, %c0_12, %c0_13] : memref<1x32x384xf32, #tpu.memory_space<vmem>>, vector<1x32x384xf32>
    %9 = vector.shape_cast %8 : vector<1x32x384xf32> to vector<32x384xf32>
    %cst = arith.constant dense<0.000000e+00> : vector<64x384xf32>
    %10 = tpu.matmul %7, %9, %cst {dimension_numbers = #tpu.dot_dimension_numbers<[1], [0], [0], [1], [0, 0, 1, 1], [], []>} : vector<64x32xf32>, vector<32x384xf32>, vector<64x384xf32> -> vector<64x384xf32>
    %c0_14 = arith.constant 0 : index
    %c0_15 = arith.constant 0 : index
    %c0_16 = arith.constant 0 : index
    %11 = vector.load %arg5[%c0_14, %c0_15, %c0_16] : memref<1x1x384xf32, #tpu.memory_space<vmem>>, vector<1x1x384xf32>
    %12 = vector.shape_cast %11 : vector<1x1x384xf32> to vector<1x384xf32>
    %13 = vector.broadcast %12 : vector<1x384xf32> to vector<64x384xf32>
    %14 = arith.addf %10, %13 : vector<64x384xf32>
    %cst_17 = arith.constant 0.000000e+00 : f32
    %15 = vector.broadcast %cst_17 : f32 to vector<8x128xf32>
    %cst_18 = arith.constant 0.000000e+00 : f32
    %16 = vector.broadcast %cst_18 : f32 to vector<8x128xf32>
    %17 = vector.extract_strided_slice %14 {offsets = [0, 0], sizes = [8, 384], strides = [1, 1]} : vector<64x384xf32> to vector<8x384xf32>
    %cst_19 = arith.constant dense<0.000000e+00> : vector<8x384xf32>
    %18 = tpu.matmul %15, %1, %cst_19 {dimension_numbers = #tpu.dot_dimension_numbers<[1], [0], [0], [1], [0, 0, 1, 1], [], []>} : vector<8x128xf32>, vector<128x384xf32>, vector<8x384xf32> -> vector<8x384xf32>
    %19 = vector.broadcast %3 : vector<1x384xf32> to vector<8x384xf32>
    %20 = arith.addf %18, %19 : vector<8x384xf32>
    %21 = vector.extract_strided_slice %17 {offsets = [0, 0], sizes = [8, 128], strides = [1, 1]} : vector<8x384xf32> to vector<8x128xf32>
    %22 = vector.extract_strided_slice %20 {offsets = [0, 0], sizes = [8, 128], strides = [1, 1]} : vector<8x384xf32> to vector<8x128xf32>
    %23 = arith.addf %21, %22 : vector<8x128xf32>
    %24 = arith.negf %23 : vector<8x128xf32>
    %25 = math.exp %24 : vector<8x128xf32>
    %cst_20 = arith.constant 1.000000e+00 : f32
    %26 = vector.broadcast %cst_20 : f32 to vector<8x128xf32>
    %27 = arith.addf %26, %25 : vector<8x128xf32>
    %28 = arith.divf %26, %27 : vector<8x128xf32>
    %29 = vector.extract_strided_slice %17 {offsets = [0, 128], sizes = [8, 128], strides = [1, 1]} : vector<8x384xf32> to vector<8x128xf32>
    %30 = vector.extract_strided_slice %20 {offsets = [0, 128], sizes = [8, 128], strides = [1, 1]} : vector<8x384xf32> to vector<8x128xf32>
    %31 = arith.addf %29, %30 : vector<8x128xf32>
    %32 = arith.negf %31 : vector<8x128xf32>
    %33 = math.exp %32 : vector<8x128xf32>
    %cst_21 = arith.constant 1.000000e+00 : f32
    %34 = vector.broadcast %cst_21 : f32 to vector<8x128xf32>
    %35 = arith.addf %34, %33 : vector<8x128xf32>
    %36 = arith.divf %34, %35 : vector<8x128xf32>
    %37 = vector.extract_strided_slice %17 {offsets = [0, 256], sizes = [8, 128], strides = [1, 1]} : vector<8x384xf32> to vector<8x128xf32>
    %38 = vector.extract_strided_slice %20 {offsets = [0, 256], sizes = [8, 128], strides = [1, 1]} : vector<8x384xf32> to vector<8x128xf32>
    %39 = arith.mulf %28, %38 : vector<8x128xf32>
    %40 = arith.addf %37, %39 : vector<8x128xf32>
    %41 = math.tanh %40 : vector<8x128xf32>
    %cst_22 = arith.constant 1.000000e+00 : f32
    %42 = vector.broadcast %cst_22 : f32 to vector<8x128xf32>
    %43 = arith.subf %42, %36 : vector<8x128xf32>
    %44 = arith.mulf %43, %41 : vector<8x128xf32>
    %45 = arith.mulf %36, %15 : vector<8x128xf32>
    %46 = arith.addf %44, %45 : vector<8x128xf32>
    %47 = vector.extract_strided_slice %5 {offsets = [0, 0], sizes = [8, 1], strides = [1, 1]} : vector<8x8xf32> to vector<8x1xf32>
    %48 = vector.broadcast %47 : vector<8x1xf32> to vector<8x128xf32>
    %49 = arith.mulf %48, %46 : vector<8x128xf32>
    %50 = arith.addf %16, %49 : vector<8x128xf32>
    %51 = vector.extract_strided_slice %14 {offsets = [8, 0], sizes = [8, 384], strides = [1, 1]} : vector<64x384xf32> to vector<8x384xf32>
    %cst_23 = arith.constant dense<0.000000e+00> : vector<8x384xf32>
    %52 = tpu.matmul %46, %1, %cst_23 {dimension_numbers = #tpu.dot_dimension_numbers<[1], [0], [0], [1], [0, 0, 1, 1], [], []>} : vector<8x128xf32>, vector<128x384xf32>, vector<8x384xf32> -> vector<8x384xf32>
    %53 = vector.broadcast %3 : vector<1x384xf32> to vector<8x384xf32>
    %54 = arith.addf %52, %53 : vector<8x384xf32>
    %55 = vector.extract_strided_slice %51 {offsets = [0, 0], sizes = [8, 128], strides = [1, 1]} : vector<8x384xf32> to vector<8x128xf32>
    %56 = vector.extract_strided_slice %54 {offsets = [0, 0], sizes = [8, 128], strides = [1, 1]} : vector<8x384xf32> to vector<8x128xf32>
    %57 = arith.addf %55, %56 : vector<8x128xf32>
    %58 = arith.negf %57 : vector<8x128xf32>
    %59 = math.exp %58 : vector<8x128xf32>
    %cst_24 = arith.constant 1.000000e+00 : f32
    %60 = vector.broadcast %cst_24 : f32 to vector<8x128xf32>
    %61 = arith.addf %60, %59 : vector<8x128xf32>
    %62 = arith.divf %60, %61 : vector<8x128xf32>
    %63 = vector.extract_strided_slice %51 {offsets = [0, 128], sizes = [8, 128], strides = [1, 1]} : vector<8x384xf32> to vector<8x128xf32>
    %64 = vector.extract_strided_slice %54 {offsets = [0, 128], sizes = [8, 128], strides = [1, 1]} : vector<8x384xf32> to vector<8x128xf32>
    %65 = arith.addf %63, %64 : vector<8x128xf32>
    %66 = arith.negf %65 : vector<8x128xf32>
    %67 = math.exp %66 : vector<8x128xf32>
    %cst_25 = arith.constant 1.000000e+00 : f32
    %68 = vector.broadcast %cst_25 : f32 to vector<8x128xf32>
    %69 = arith.addf %68, %67 : vector<8x128xf32>
    %70 = arith.divf %68, %69 : vector<8x128xf32>
    %71 = vector.extract_strided_slice %51 {offsets = [0, 256], sizes = [8, 128], strides = [1, 1]} : vector<8x384xf32> to vector<8x128xf32>
    %72 = vector.extract_strided_slice %54 {offsets = [0, 256], sizes = [8, 128], strides = [1, 1]} : vector<8x384xf32> to vector<8x128xf32>
    %73 = arith.mulf %62, %72 : vector<8x128xf32>
    %74 = arith.addf %71, %73 : vector<8x128xf32>
    %75 = math.tanh %74 : vector<8x128xf32>
    %cst_26 = arith.constant 1.000000e+00 : f32
    %76 = vector.broadcast %cst_26 : f32 to vector<8x128xf32>
    %77 = arith.subf %76, %70 : vector<8x128xf32>
    %78 = arith.mulf %77, %75 : vector<8x128xf32>
    %79 = arith.mulf %70, %46 : vector<8x128xf32>
    %80 = arith.addf %78, %79 : vector<8x128xf32>
    %81 = vector.extract_strided_slice %5 {offsets = [0, 1], sizes = [8, 1], strides = [1, 1]} : vector<8x8xf32> to vector<8x1xf32>
    %82 = vector.broadcast %81 : vector<8x1xf32> to vector<8x128xf32>
    %83 = arith.mulf %82, %80 : vector<8x128xf32>
    %84 = arith.addf %50, %83 : vector<8x128xf32>
    %85 = vector.extract_strided_slice %14 {offsets = [16, 0], sizes = [8, 384], strides = [1, 1]} : vector<64x384xf32> to vector<8x384xf32>
    %cst_27 = arith.constant dense<0.000000e+00> : vector<8x384xf32>
    %86 = tpu.matmul %80, %1, %cst_27 {dimension_numbers = #tpu.dot_dimension_numbers<[1], [0], [0], [1], [0, 0, 1, 1], [], []>} : vector<8x128xf32>, vector<128x384xf32>, vector<8x384xf32> -> vector<8x384xf32>
    %87 = vector.broadcast %3 : vector<1x384xf32> to vector<8x384xf32>
    %88 = arith.addf %86, %87 : vector<8x384xf32>
    %89 = vector.extract_strided_slice %85 {offsets = [0, 0], sizes = [8, 128], strides = [1, 1]} : vector<8x384xf32> to vector<8x128xf32>
    %90 = vector.extract_strided_slice %88 {offsets = [0, 0], sizes = [8, 128], strides = [1, 1]} : vector<8x384xf32> to vector<8x128xf32>
    %91 = arith.addf %89, %90 : vector<8x128xf32>
    %92 = arith.negf %91 : vector<8x128xf32>
    %93 = math.exp %92 : vector<8x128xf32>
    %cst_28 = arith.constant 1.000000e+00 : f32
    %94 = vector.broadcast %cst_28 : f32 to vector<8x128xf32>
    %95 = arith.addf %94, %93 : vector<8x128xf32>
    %96 = arith.divf %94, %95 : vector<8x128xf32>
    %97 = vector.extract_strided_slice %85 {offsets = [0, 128], sizes = [8, 128], strides = [1, 1]} : vector<8x384xf32> to vector<8x128xf32>
    %98 = vector.extract_strided_slice %88 {offsets = [0, 128], sizes = [8, 128], strides = [1, 1]} : vector<8x384xf32> to vector<8x128xf32>
    %99 = arith.addf %97, %98 : vector<8x128xf32>
    %100 = arith.negf %99 : vector<8x128xf32>
    %101 = math.exp %100 : vector<8x128xf32>
    %cst_29 = arith.constant 1.000000e+00 : f32
    %102 = vector.broadcast %cst_29 : f32 to vector<8x128xf32>
    %103 = arith.addf %102, %101 : vector<8x128xf32>
    %104 = arith.divf %102, %103 : vector<8x128xf32>
    %105 = vector.extract_strided_slice %85 {offsets = [0, 256], sizes = [8, 128], strides = [1, 1]} : vector<8x384xf32> to vector<8x128xf32>
    %106 = vector.extract_strided_slice %88 {offsets = [0, 256], sizes = [8, 128], strides = [1, 1]} : vector<8x384xf32> to vector<8x128xf32>
    %107 = arith.mulf %96, %106 : vector<8x128xf32>
    %108 = arith.addf %105, %107 : vector<8x128xf32>
    %109 = math.tanh %108 : vector<8x128xf32>
    %cst_30 = arith.constant 1.000000e+00 : f32
    %110 = vector.broadcast %cst_30 : f32 to vector<8x128xf32>
    %111 = arith.subf %110, %104 : vector<8x128xf32>
    %112 = arith.mulf %111, %109 : vector<8x128xf32>
    %113 = arith.mulf %104, %80 : vector<8x128xf32>
    %114 = arith.addf %112, %113 : vector<8x128xf32>
    %115 = vector.extract_strided_slice %5 {offsets = [0, 2], sizes = [8, 1], strides = [1, 1]} : vector<8x8xf32> to vector<8x1xf32>
    %116 = vector.broadcast %115 : vector<8x1xf32> to vector<8x128xf32>
    %117 = arith.mulf %116, %114 : vector<8x128xf32>
    %118 = arith.addf %84, %117 : vector<8x128xf32>
    %119 = vector.extract_strided_slice %14 {offsets = [24, 0], sizes = [8, 384], strides = [1, 1]} : vector<64x384xf32> to vector<8x384xf32>
    %cst_31 = arith.constant dense<0.000000e+00> : vector<8x384xf32>
    %120 = tpu.matmul %114, %1, %cst_31 {dimension_numbers = #tpu.dot_dimension_numbers<[1], [0], [0], [1], [0, 0, 1, 1], [], []>} : vector<8x128xf32>, vector<128x384xf32>, vector<8x384xf32> -> vector<8x384xf32>
    %121 = vector.broadcast %3 : vector<1x384xf32> to vector<8x384xf32>
    %122 = arith.addf %120, %121 : vector<8x384xf32>
    %123 = vector.extract_strided_slice %119 {offsets = [0, 0], sizes = [8, 128], strides = [1, 1]} : vector<8x384xf32> to vector<8x128xf32>
    %124 = vector.extract_strided_slice %122 {offsets = [0, 0], sizes = [8, 128], strides = [1, 1]} : vector<8x384xf32> to vector<8x128xf32>
    %125 = arith.addf %123, %124 : vector<8x128xf32>
    %126 = arith.negf %125 : vector<8x128xf32>
    %127 = math.exp %126 : vector<8x128xf32>
    %cst_32 = arith.constant 1.000000e+00 : f32
    %128 = vector.broadcast %cst_32 : f32 to vector<8x128xf32>
    %129 = arith.addf %128, %127 : vector<8x128xf32>
    %130 = arith.divf %128, %129 : vector<8x128xf32>
    %131 = vector.extract_strided_slice %119 {offsets = [0, 128], sizes = [8, 128], strides = [1, 1]} : vector<8x384xf32> to vector<8x128xf32>
    %132 = vector.extract_strided_slice %122 {offsets = [0, 128], sizes = [8, 128], strides = [1, 1]} : vector<8x384xf32> to vector<8x128xf32>
    %133 = arith.addf %131, %132 : vector<8x128xf32>
    %134 = arith.negf %133 : vector<8x128xf32>
    %135 = math.exp %134 : vector<8x128xf32>
    %cst_33 = arith.constant 1.000000e+00 : f32
    %136 = vector.broadcast %cst_33 : f32 to vector<8x128xf32>
    %137 = arith.addf %136, %135 : vector<8x128xf32>
    %138 = arith.divf %136, %137 : vector<8x128xf32>
    %139 = vector.extract_strided_slice %119 {offsets = [0, 256], sizes = [8, 128], strides = [1, 1]} : vector<8x384xf32> to vector<8x128xf32>
    %140 = vector.extract_strided_slice %122 {offsets = [0, 256], sizes = [8, 128], strides = [1, 1]} : vector<8x384xf32> to vector<8x128xf32>
    %141 = arith.mulf %130, %140 : vector<8x128xf32>
    %142 = arith.addf %139, %141 : vector<8x128xf32>
    %143 = math.tanh %142 : vector<8x128xf32>
    %cst_34 = arith.constant 1.000000e+00 : f32
    %144 = vector.broadcast %cst_34 : f32 to vector<8x128xf32>
    %145 = arith.subf %144, %138 : vector<8x128xf32>
    %146 = arith.mulf %145, %143 : vector<8x128xf32>
    %147 = arith.mulf %138, %114 : vector<8x128xf32>
    %148 = arith.addf %146, %147 : vector<8x128xf32>
    %149 = vector.extract_strided_slice %5 {offsets = [0, 3], sizes = [8, 1], strides = [1, 1]} : vector<8x8xf32> to vector<8x1xf32>
    %150 = vector.broadcast %149 : vector<8x1xf32> to vector<8x128xf32>
    %151 = arith.mulf %150, %148 : vector<8x128xf32>
    %152 = arith.addf %118, %151 : vector<8x128xf32>
    %153 = vector.extract_strided_slice %14 {offsets = [32, 0], sizes = [8, 384], strides = [1, 1]} : vector<64x384xf32> to vector<8x384xf32>
    %cst_35 = arith.constant dense<0.000000e+00> : vector<8x384xf32>
    %154 = tpu.matmul %148, %1, %cst_35 {dimension_numbers = #tpu.dot_dimension_numbers<[1], [0], [0], [1], [0, 0, 1, 1], [], []>} : vector<8x128xf32>, vector<128x384xf32>, vector<8x384xf32> -> vector<8x384xf32>
    %155 = vector.broadcast %3 : vector<1x384xf32> to vector<8x384xf32>
    %156 = arith.addf %154, %155 : vector<8x384xf32>
    %157 = vector.extract_strided_slice %153 {offsets = [0, 0], sizes = [8, 128], strides = [1, 1]} : vector<8x384xf32> to vector<8x128xf32>
    %158 = vector.extract_strided_slice %156 {offsets = [0, 0], sizes = [8, 128], strides = [1, 1]} : vector<8x384xf32> to vector<8x128xf32>
    %159 = arith.addf %157, %158 : vector<8x128xf32>
    %160 = arith.negf %159 : vector<8x128xf32>
    %161 = math.exp %160 : vector<8x128xf32>
    %cst_36 = arith.constant 1.000000e+00 : f32
    %162 = vector.broadcast %cst_36 : f32 to vector<8x128xf32>
    %163 = arith.addf %162, %161 : vector<8x128xf32>
    %164 = arith.divf %162, %163 : vector<8x128xf32>
    %165 = vector.extract_strided_slice %153 {offsets = [0, 128], sizes = [8, 128], strides = [1, 1]} : vector<8x384xf32> to vector<8x128xf32>
    %166 = vector.extract_strided_slice %156 {offsets = [0, 128], sizes = [8, 128], strides = [1, 1]} : vector<8x384xf32> to vector<8x128xf32>
    %167 = arith.addf %165, %166 : vector<8x128xf32>
    %168 = arith.negf %167 : vector<8x128xf32>
    %169 = math.exp %168 : vector<8x128xf32>
    %cst_37 = arith.constant 1.000000e+00 : f32
    %170 = vector.broadcast %cst_37 : f32 to vector<8x128xf32>
    %171 = arith.addf %170, %169 : vector<8x128xf32>
    %172 = arith.divf %170, %171 : vector<8x128xf32>
    %173 = vector.extract_strided_slice %153 {offsets = [0, 256], sizes = [8, 128], strides = [1, 1]} : vector<8x384xf32> to vector<8x128xf32>
    %174 = vector.extract_strided_slice %156 {offsets = [0, 256], sizes = [8, 128], strides = [1, 1]} : vector<8x384xf32> to vector<8x128xf32>
    %175 = arith.mulf %164, %174 : vector<8x128xf32>
    %176 = arith.addf %173, %175 : vector<8x128xf32>
    %177 = math.tanh %176 : vector<8x128xf32>
    %cst_38 = arith.constant 1.000000e+00 : f32
    %178 = vector.broadcast %cst_38 : f32 to vector<8x128xf32>
    %179 = arith.subf %178, %172 : vector<8x128xf32>
    %180 = arith.mulf %179, %177 : vector<8x128xf32>
    %181 = arith.mulf %172, %148 : vector<8x128xf32>
    %182 = arith.addf %180, %181 : vector<8x128xf32>
    %183 = vector.extract_strided_slice %5 {offsets = [0, 4], sizes = [8, 1], strides = [1, 1]} : vector<8x8xf32> to vector<8x1xf32>
    %184 = vector.broadcast %183 : vector<8x1xf32> to vector<8x128xf32>
    %185 = arith.mulf %184, %182 : vector<8x128xf32>
    %186 = arith.addf %152, %185 : vector<8x128xf32>
    %187 = vector.extract_strided_slice %14 {offsets = [40, 0], sizes = [8, 384], strides = [1, 1]} : vector<64x384xf32> to vector<8x384xf32>
    %cst_39 = arith.constant dense<0.000000e+00> : vector<8x384xf32>
    %188 = tpu.matmul %182, %1, %cst_39 {dimension_numbers = #tpu.dot_dimension_numbers<[1], [0], [0], [1], [0, 0, 1, 1], [], []>} : vector<8x128xf32>, vector<128x384xf32>, vector<8x384xf32> -> vector<8x384xf32>
    %189 = vector.broadcast %3 : vector<1x384xf32> to vector<8x384xf32>
    %190 = arith.addf %188, %189 : vector<8x384xf32>
    %191 = vector.extract_strided_slice %187 {offsets = [0, 0], sizes = [8, 128], strides = [1, 1]} : vector<8x384xf32> to vector<8x128xf32>
    %192 = vector.extract_strided_slice %190 {offsets = [0, 0], sizes = [8, 128], strides = [1, 1]} : vector<8x384xf32> to vector<8x128xf32>
    %193 = arith.addf %191, %192 : vector<8x128xf32>
    %194 = arith.negf %193 : vector<8x128xf32>
    %195 = math.exp %194 : vector<8x128xf32>
    %cst_40 = arith.constant 1.000000e+00 : f32
    %196 = vector.broadcast %cst_40 : f32 to vector<8x128xf32>
    %197 = arith.addf %196, %195 : vector<8x128xf32>
    %198 = arith.divf %196, %197 : vector<8x128xf32>
    %199 = vector.extract_strided_slice %187 {offsets = [0, 128], sizes = [8, 128], strides = [1, 1]} : vector<8x384xf32> to vector<8x128xf32>
    %200 = vector.extract_strided_slice %190 {offsets = [0, 128], sizes = [8, 128], strides = [1, 1]} : vector<8x384xf32> to vector<8x128xf32>
    %201 = arith.addf %199, %200 : vector<8x128xf32>
    %202 = arith.negf %201 : vector<8x128xf32>
    %203 = math.exp %202 : vector<8x128xf32>
    %cst_41 = arith.constant 1.000000e+00 : f32
    %204 = vector.broadcast %cst_41 : f32 to vector<8x128xf32>
    %205 = arith.addf %204, %203 : vector<8x128xf32>
    %206 = arith.divf %204, %205 : vector<8x128xf32>
    %207 = vector.extract_strided_slice %187 {offsets = [0, 256], sizes = [8, 128], strides = [1, 1]} : vector<8x384xf32> to vector<8x128xf32>
    %208 = vector.extract_strided_slice %190 {offsets = [0, 256], sizes = [8, 128], strides = [1, 1]} : vector<8x384xf32> to vector<8x128xf32>
    %209 = arith.mulf %198, %208 : vector<8x128xf32>
    %210 = arith.addf %207, %209 : vector<8x128xf32>
    %211 = math.tanh %210 : vector<8x128xf32>
    %cst_42 = arith.constant 1.000000e+00 : f32
    %212 = vector.broadcast %cst_42 : f32 to vector<8x128xf32>
    %213 = arith.subf %212, %206 : vector<8x128xf32>
    %214 = arith.mulf %213, %211 : vector<8x128xf32>
    %215 = arith.mulf %206, %182 : vector<8x128xf32>
    %216 = arith.addf %214, %215 : vector<8x128xf32>
    %217 = vector.extract_strided_slice %5 {offsets = [0, 5], sizes = [8, 1], strides = [1, 1]} : vector<8x8xf32> to vector<8x1xf32>
    %218 = vector.broadcast %217 : vector<8x1xf32> to vector<8x128xf32>
    %219 = arith.mulf %218, %216 : vector<8x128xf32>
    %220 = arith.addf %186, %219 : vector<8x128xf32>
    %221 = vector.extract_strided_slice %14 {offsets = [48, 0], sizes = [8, 384], strides = [1, 1]} : vector<64x384xf32> to vector<8x384xf32>
    %cst_43 = arith.constant dense<0.000000e+00> : vector<8x384xf32>
    %222 = tpu.matmul %216, %1, %cst_43 {dimension_numbers = #tpu.dot_dimension_numbers<[1], [0], [0], [1], [0, 0, 1, 1], [], []>} : vector<8x128xf32>, vector<128x384xf32>, vector<8x384xf32> -> vector<8x384xf32>
    %223 = vector.broadcast %3 : vector<1x384xf32> to vector<8x384xf32>
    %224 = arith.addf %222, %223 : vector<8x384xf32>
    %225 = vector.extract_strided_slice %221 {offsets = [0, 0], sizes = [8, 128], strides = [1, 1]} : vector<8x384xf32> to vector<8x128xf32>
    %226 = vector.extract_strided_slice %224 {offsets = [0, 0], sizes = [8, 128], strides = [1, 1]} : vector<8x384xf32> to vector<8x128xf32>
    %227 = arith.addf %225, %226 : vector<8x128xf32>
    %228 = arith.negf %227 : vector<8x128xf32>
    %229 = math.exp %228 : vector<8x128xf32>
    %cst_44 = arith.constant 1.000000e+00 : f32
    %230 = vector.broadcast %cst_44 : f32 to vector<8x128xf32>
    %231 = arith.addf %230, %229 : vector<8x128xf32>
    %232 = arith.divf %230, %231 : vector<8x128xf32>
    %233 = vector.extract_strided_slice %221 {offsets = [0, 128], sizes = [8, 128], strides = [1, 1]} : vector<8x384xf32> to vector<8x128xf32>
    %234 = vector.extract_strided_slice %224 {offsets = [0, 128], sizes = [8, 128], strides = [1, 1]} : vector<8x384xf32> to vector<8x128xf32>
    %235 = arith.addf %233, %234 : vector<8x128xf32>
    %236 = arith.negf %235 : vector<8x128xf32>
    %237 = math.exp %236 : vector<8x128xf32>
    %cst_45 = arith.constant 1.000000e+00 : f32
    %238 = vector.broadcast %cst_45 : f32 to vector<8x128xf32>
    %239 = arith.addf %238, %237 : vector<8x128xf32>
    %240 = arith.divf %238, %239 : vector<8x128xf32>
    %241 = vector.extract_strided_slice %221 {offsets = [0, 256], sizes = [8, 128], strides = [1, 1]} : vector<8x384xf32> to vector<8x128xf32>
    %242 = vector.extract_strided_slice %224 {offsets = [0, 256], sizes = [8, 128], strides = [1, 1]} : vector<8x384xf32> to vector<8x128xf32>
    %243 = arith.mulf %232, %242 : vector<8x128xf32>
    %244 = arith.addf %241, %243 : vector<8x128xf32>
    %245 = math.tanh %244 : vector<8x128xf32>
    %cst_46 = arith.constant 1.000000e+00 : f32
    %246 = vector.broadcast %cst_46 : f32 to vector<8x128xf32>
    %247 = arith.subf %246, %240 : vector<8x128xf32>
    %248 = arith.mulf %247, %245 : vector<8x128xf32>
    %249 = arith.mulf %240, %216 : vector<8x128xf32>
    %250 = arith.addf %248, %249 : vector<8x128xf32>
    %251 = vector.extract_strided_slice %5 {offsets = [0, 6], sizes = [8, 1], strides = [1, 1]} : vector<8x8xf32> to vector<8x1xf32>
    %252 = vector.broadcast %251 : vector<8x1xf32> to vector<8x128xf32>
    %253 = arith.mulf %252, %250 : vector<8x128xf32>
    %254 = arith.addf %220, %253 : vector<8x128xf32>
    %255 = vector.extract_strided_slice %14 {offsets = [56, 0], sizes = [8, 384], strides = [1, 1]} : vector<64x384xf32> to vector<8x384xf32>
    %cst_47 = arith.constant dense<0.000000e+00> : vector<8x384xf32>
    %256 = tpu.matmul %250, %1, %cst_47 {dimension_numbers = #tpu.dot_dimension_numbers<[1], [0], [0], [1], [0, 0, 1, 1], [], []>} : vector<8x128xf32>, vector<128x384xf32>, vector<8x384xf32> -> vector<8x384xf32>
    %257 = vector.broadcast %3 : vector<1x384xf32> to vector<8x384xf32>
    %258 = arith.addf %256, %257 : vector<8x384xf32>
    %259 = vector.extract_strided_slice %255 {offsets = [0, 0], sizes = [8, 128], strides = [1, 1]} : vector<8x384xf32> to vector<8x128xf32>
    %260 = vector.extract_strided_slice %258 {offsets = [0, 0], sizes = [8, 128], strides = [1, 1]} : vector<8x384xf32> to vector<8x128xf32>
    %261 = arith.addf %259, %260 : vector<8x128xf32>
    %262 = arith.negf %261 : vector<8x128xf32>
    %263 = math.exp %262 : vector<8x128xf32>
    %cst_48 = arith.constant 1.000000e+00 : f32
    %264 = vector.broadcast %cst_48 : f32 to vector<8x128xf32>
    %265 = arith.addf %264, %263 : vector<8x128xf32>
    %266 = arith.divf %264, %265 : vector<8x128xf32>
    %267 = vector.extract_strided_slice %255 {offsets = [0, 128], sizes = [8, 128], strides = [1, 1]} : vector<8x384xf32> to vector<8x128xf32>
    %268 = vector.extract_strided_slice %258 {offsets = [0, 128], sizes = [8, 128], strides = [1, 1]} : vector<8x384xf32> to vector<8x128xf32>
    %269 = arith.addf %267, %268 : vector<8x128xf32>
    %270 = arith.negf %269 : vector<8x128xf32>
    %271 = math.exp %270 : vector<8x128xf32>
    %cst_49 = arith.constant 1.000000e+00 : f32
    %272 = vector.broadcast %cst_49 : f32 to vector<8x128xf32>
    %273 = arith.addf %272, %271 : vector<8x128xf32>
    %274 = arith.divf %272, %273 : vector<8x128xf32>
    %275 = vector.extract_strided_slice %255 {offsets = [0, 256], sizes = [8, 128], strides = [1, 1]} : vector<8x384xf32> to vector<8x128xf32>
    %276 = vector.extract_strided_slice %258 {offsets = [0, 256], sizes = [8, 128], strides = [1, 1]} : vector<8x384xf32> to vector<8x128xf32>
    %277 = arith.mulf %266, %276 : vector<8x128xf32>
    %278 = arith.addf %275, %277 : vector<8x128xf32>
    %279 = math.tanh %278 : vector<8x128xf32>
    %cst_50 = arith.constant 1.000000e+00 : f32
    %280 = vector.broadcast %cst_50 : f32 to vector<8x128xf32>
    %281 = arith.subf %280, %274 : vector<8x128xf32>
    %282 = arith.mulf %281, %279 : vector<8x128xf32>
    %283 = arith.mulf %274, %250 : vector<8x128xf32>
    %284 = arith.addf %282, %283 : vector<8x128xf32>
    %285 = vector.extract_strided_slice %5 {offsets = [0, 7], sizes = [8, 1], strides = [1, 1]} : vector<8x8xf32> to vector<8x1xf32>
    %286 = vector.broadcast %285 : vector<8x1xf32> to vector<8x128xf32>
    %287 = arith.mulf %286, %284 : vector<8x128xf32>
    %288 = arith.addf %254, %287 : vector<8x128xf32>
    %c0_51 = arith.constant 0 : index
    %c0_52 = arith.constant 0 : index
    %c0_53 = arith.constant 0 : index
    %289 = vector.load %arg7[%c0_51, %c0_52, %c0_53] : memref<1x8x128xf32, #tpu.memory_space<vmem>>, vector<1x8x128xf32>
    %290 = vector.shape_cast %289 : vector<1x8x128xf32> to vector<8x128xf32>
    %291 = vector.shape_cast %288 : vector<8x128xf32> to vector<1x8x128xf32>
    tpu.vector_store %arg7[%c0_51, %c0_52, %c0_53], %291 {strides = array<i32>} : memref<1x8x128xf32, #tpu.memory_space<vmem>>, vector<1x8x128xf32>,
    return
  }
  func.func @transform_0(%arg0: i32) -> (i32, i32, i32) {
    %c0_i32 = arith.constant 0 : i32
    %c0_i32_0 = arith.constant 0 : i32
    %c0_i32_1 = arith.constant 0 : i32
    return %arg0, %c0_i32, %c0_i32_0 : i32, i32, i32
  }
  func.func @transform_1(%arg0: i32) -> (i32, i32, i32) {
    %c0_i32 = arith.constant 0 : i32
    %c0_i32_0 = arith.constant 0 : i32
    %c0_i32_1 = arith.constant 0 : i32
    return %arg0, %c0_i32, %c0_i32_0 : i32, i32, i32
  }
  func.func @transform_2(%arg0: i32) -> (i32, i32, i32) {
    %c0_i32 = arith.constant 0 : i32
    %c0_i32_0 = arith.constant 0 : i32
    %c0_i32_1 = arith.constant 0 : i32
    return %arg0, %c0_i32, %c0_i32_0 : i32, i32, i32
  }
  func.func @transform_3(%arg0: i32) -> (i32, i32, i32) {
    %c0_i32 = arith.constant 0 : i32
    %c0_i32_0 = arith.constant 0 : i32
    %c0_i32_1 = arith.constant 0 : i32
    return %arg0, %c0_i32, %c0_i32_0 : i32, i32, i32
  }
  func.func @transform_4(%arg0: i32) -> (i32, i32, i32) {
    %c0_i32 = arith.constant 0 : i32
    %c0_i32_0 = arith.constant 0 : i32
    %c0_i32_1 = arith.constant 0 : i32
    return %arg0, %c0_i32, %c0_i32_0 : i32, i32, i32
  }
  func.func @transform_5(%arg0: i32) -> (i32, i32, i32) {
    %c0_i32 = arith.constant 0 : i32
    %c0_i32_0 = arith.constant 0 : i32
    %c0_i32_1 = arith.constant 0 : i32
    return %arg0, %c0_i32, %c0_i32_0 : i32, i32, i32
  }
  func.func @transform_6(%arg0: i32) -> (i32, i32, i32) {
    %c0_i32 = arith.constant 0 : i32
    %c0_i32_0 = arith.constant 0 : i32
    %c0_i32_1 = arith.constant 0 : i32
    return %arg0, %c0_i32, %c0_i32_0 : i32, i32, i32
  }
}

</mosaic_0001>

<llo_original>
// kernel: tpu_custom_call.1
$region0: #{tpu_custom_call.1}
  #allocation0 [shape = 'u32[]', space=smem, size = 0x4, offset = 0x4, fixed_abs, tag = 'smem constant byte address 0x4 - core index']
  #allocation1 [shape = 'u32[144,128]{1,0:T(1,128)}', space=vmem, size = 0x12000, scoped, tag = 'internal scratch']
  %s0 = inlined_call_operand.vmem [shape: f32[2,64,32], index: 0, kind: input, shape index: {}]
  %s1 = inlined_call_operand.hbm [shape: f32[2,8,8], index: 1, kind: input, shape index: {}]
  %s2 = inlined_call_operand.vmem [shape: f32[2,32,384], index: 2, kind: input, shape index: {}]
  %s3 = inlined_call_operand.hbm [shape: f32[2,128,384], index: 3, kind: input, shape index: {}]
  %s4 = inlined_call_operand.vmem [shape: f32[2,1,384], index: 4, kind: input, shape index: {}]
  %s5 = inlined_call_operand.hbm [shape: f32[2,1,384], index: 5, kind: input, shape index: {}]
  %s6 = inlined_call_operand.hbm [shape: f32[2,8,128], index: 6, kind: output, shape index: {}]
  %s7 = sld [smem:[#allocation0]]
  $region69: #{tpu_custom_call.1} parent=0
    _
  %s9 = ssub.s32 1, %s7
  %s10 = scalar_select 0, %s9, %s7
  $region1: #{tpu_custom_call.1} parent=0
    #allocation2 [shape = 'u8[8192]{0}', space=vmem, size = 0x2000, scoped, tag = 'input window, operand 1']
    #allocation3 [shape = 's32[2]{0}', space=sflag, size = 0x8, scoped, tag = 'scoped memory for tpu_custom_call.1']
    #allocation4 [shape = 's32[2]{0}', space=sflag, size = 0x8, scoped, tag = 'scoped memory for tpu_custom_call.1']
    #allocation5 [shape = 'u8[393216]{0}', space=vmem, size = 0x60000, scoped, tag = 'input window, operand 3']
    #allocation6 [shape = 's32[2]{0}', space=sflag, size = 0x8, scoped, tag = 'scoped memory for tpu_custom_call.1']
    #allocation7 [shape = 'u8[3072]{0}', space=vmem, size = 0xc00, scoped, tag = 'input window, operand 5']
    #allocation8 [shape = 'u8[8192]{0}', space=vmem, size = 0x2000, scoped, tag = 'output window, operand 0']
    %11 = vsyncpa [#allocation3], 0
    %s12 = scalar_lea.sflag [#allocation3], 1
    %13 = vsyncpa %s12, 0
    %14 = vsyncpa [#allocation6], 0
    %s15 = scalar_lea.sflag [#allocation6], 1
    %16 = vsyncpa %s15, 0
    %17 = vsyncpa [#allocation4], 0
    %s18 = scalar_lea.sflag [#allocation4], 1
    %19 = vsyncpa %s18, 0
    loop: start=0, step=1, limit=4
    $region2: #{tpu_custom_call.1} parent=1 // loop_pre_header
      _
    $region3: #{tpu_custom_call.1} parent=1 // loop_header
      %s21 = sphi 0, %s25
      %p22 = scmp.ge.s32.totalorder %s21, 4
      %s31 = sphi 0, %s33
      %s34 = sphi 0, %s31
      %s35 = sphi 0, %s34
      %s51 = sphi 0, %s35
      %s57 = sphi 0, %s59
      %s60 = sphi 0, %s57
      %s61 = sphi 0, %s60
      %s77 = sphi 0, %s61
      %s83 = sphi 0, %s85
      %s86 = sphi 0, %s83
      %s87 = sphi 0, %s86
      %s103 = sphi 0, %s87
      %s109 = sphi 0, %s111
      %s112 = sphi 0, %s109
      %s113 = sphi 0, %s112
      %s129 = sphi 0, %s113
      %s135 = sphi 0, %s137
      %s138 = sphi 0, %s135
      %s139 = sphi 0, %s138
      %s155 = sphi 0, %s139
      %s161 = sphi 0, %s163
      %s164 = sphi 0, %s161
      %s165 = sphi 0, %s164
      %s181 = sphi 0, %s165
      %s187 = sphi 0, %s189
      %s190 = sphi 0, %s187
      %s191 = sphi 0, %s190
      %s207 = sphi 0, %s191
    $region4: #{tpu_custom_call.1} parent=1 // loop_header_branch
      %24 = sbr.rel (%p22) target = $region8
    $region5: #{tpu_custom_call.1} parent=1 // loop_body
      %s26 = ssub.s32 %s21, 1
      %s27 = ssub.s32 %s21, 2
      %s28 = sadd.s32 %s21, 1
      %s29 = ssub.s32 %s21, %s28
      %p30 = scmp.eq.s32.totalorder %s29, 0
      %s32 = sadd.s32 %s31, 1
      %s33 = scalar_select %p30, %s31, %s32
      %p36 = pneg %p30
      %p37 = scmp.eq.s32.totalorder %s21, 1
      %p38 = por %p36, %p37
      %p39 = scmp.ne.s32.totalorder %s31, %s34
      %p40 = scmp.eq.s32.totalorder %s21, 0
      %p41 = por %p39, %p40
      %p42 = scmp.ne.s32.totalorder %s31, %s34
      %p43 = scmp.eq.s32.totalorder %s26, 1
      %p44 = por %p42, %p43
      %p45 = scmp.ne.s32.totalorder %s34, %s35
      %p46 = scmp.eq.s32.totalorder %s26, 0
      %p47 = por %p45, %p46
      %p48 = scmp.ne.s32.totalorder %s34, %s35
      %p49 = scmp.eq.s32.totalorder %s27, 1
      %p50 = por %p48, %p49
      %p52 = scmp.ne.s32.totalorder %s35, %s51
      %p53 = scmp.eq.s32.totalorder %s27, 0
      %p54 = por %p52, %p53
      %s55 = ssub.s32 %s21, %s28
      %p56 = scmp.eq.s32.totalorder %s55, 0
      %s58 = sadd.s32 %s57, 1
      %s59 = scalar_select %p56, %s57, %s58
      %p62 = pneg %p56
      %p63 = scmp.eq.s32.totalorder %s21, 1
      %p64 = por %p62, %p63
      %p65 = scmp.ne.s32.totalorder %s57, %s60
      %p66 = scmp.eq.s32.totalorder %s21, 0
      %p67 = por %p65, %p66
      %p68 = scmp.ne.s32.totalorder %s57, %s60
      %p69 = scmp.eq.s32.totalorder %s26, 1
      %p70 = por %p68, %p69
      %p71 = scmp.ne.s32.totalorder %s60, %s61
      %p72 = scmp.eq.s32.totalorder %s26, 0
      %p73 = por %p71, %p72
      %p74 = scmp.ne.s32.totalorder %s60, %s61
      %p75 = scmp.eq.s32.totalorder %s27, 1
      %p76 = por %p74, %p75
      %p78 = scmp.ne.s32.totalorder %s61, %s77
      %p79 = scmp.eq.s32.totalorder %s27, 0
      %p80 = por %p78, %p79
      %s81 = ssub.s32 %s21, %s28
      %p82 = scmp.eq.s32.totalorder %s81, 0
      %s84 = sadd.s32 %s83, 1
      %s85 = scalar_select %p82, %s83, %s84
      %p88 = pneg %p82
      %p89 = scmp.eq.s32.totalorder %s21, 1
      %p90 = por %p88, %p89
      %p91 = scmp.ne.s32.totalorder %s83, %s86
      %p92 = scmp.eq.s32.totalorder %s21, 0
      %p93 = por %p91, %p92
      %p94 = scmp.ne.s32.totalorder %s83, %s86
      %p95 = scmp.eq.s32.totalorder %s26, 1
      %p96 = por %p94, %p95
      %p97 = scmp.ne.s32.totalorder %s86, %s87
      %p98 = scmp.eq.s32.totalorder %s26, 0
      %p99 = por %p97, %p98
      %p100 = scmp.ne.s32.totalorder %s86, %s87
      %p101 = scmp.eq.s32.totalorder %s27, 1
      %p102 = por %p100, %p101
      %p104 = scmp.ne.s32.totalorder %s87, %s103
      %p105 = scmp.eq.s32.totalorder %s27, 0
      %p106 = por %p104, %p105
      %s107 = ssub.s32 %s21, %s28
      %p108 = scmp.eq.s32.totalorder %s107, 0
      %s110 = sadd.s32 %s109, 1
      %s111 = scalar_select %p108, %s109, %s110
      %p114 = pneg %p108
      %p115 = scmp.eq.s32.totalorder %s21, 1
      %p116 = por %p114, %p115
      %p117 = scmp.ne.s32.totalorder %s109, %s112
      %p118 = scmp.eq.s32.totalorder %s21, 0
      %p119 = por %p117, %p118
      %p120 = scmp.ne.s32.totalorder %s109, %s112
      %p121 = scmp.eq.s32.totalorder %s26, 1
      %p122 = por %p120, %p121
      %p123 = scmp.ne.s32.totalorder %s112, %s113
      %p124 = scmp.eq.s32.totalorder %s26, 0
      %p125 = por %p123, %p124
      %p126 = scmp.ne.s32.totalorder %s112, %s113
      %p127 = scmp.eq.s32.totalorder %s27, 1
      %p128 = por %p126, %p127
      %p130 = scmp.ne.s32.totalorder %s113, %s129
      %p131 = scmp.eq.s32.totalorder %s27, 0
      %p132 = por %p130, %p131
      %s133 = ssub.s32 %s21, %s28
      %p134 = scmp.eq.s32.totalorder %s133, 0
      %s136 = sadd.s32 %s135, 1
      %s137 = scalar_select %p134, %s135, %s136
      %p140 = pneg %p134
      %p141 = scmp.eq.s32.totalorder %s21, 1
      %p142 = por %p140, %p141
      %p143 = scmp.ne.s32.totalorder %s135, %s138
      %p144 = scmp.eq.s32.totalorder %s21, 0
      %p145 = por %p143, %p144
      %p146 = scmp.ne.s32.totalorder %s135, %s138
      %p147 = scmp.eq.s32.totalorder %s26, 1
      %p148 = por %p146, %p147
      %p149 = scmp.ne.s32.totalorder %s138, %s139
      %p150 = scmp.eq.s32.totalorder %s26, 0
      %p151 = por %p149, %p150
      %p152 = scmp.ne.s32.totalorder %s138, %s139
      %p153 = scmp.eq.s32.totalorder %s27, 1
      %p154 = por %p152, %p153
      %p156 = scmp.ne.s32.totalorder %s139, %s155
      %p157 = scmp.eq.s32.totalorder %s27, 0
      %p158 = por %p156, %p157
      %s159 = ssub.s32 %s21, %s28
      %p160 = scmp.eq.s32.totalorder %s159, 0
      %s162 = sadd.s32 %s161, 1
      %s163 = scalar_select %p160, %s161, %s162
      %p166 = pneg %p160
      %p167 = scmp.eq.s32.totalorder %s21, 1
      %p168 = por %p166, %p167
      %p169 = scmp.ne.s32.totalorder %s161, %s164
      %p170 = scmp.eq.s32.totalorder %s21, 0
      %p171 = por %p169, %p170
      %p172 = scmp.ne.s32.totalorder %s161, %s164
      %p173 = scmp.eq.s32.totalorder %s26, 1
      %p174 = por %p172, %p173
      %p175 = scmp.ne.s32.totalorder %s164, %s165
      %p176 = scmp.eq.s32.totalorder %s26, 0
      %p177 = por %p175, %p176
      %p178 = scmp.ne.s32.totalorder %s164, %s165
      %p179 = scmp.eq.s32.totalorder %s27, 1
      %p180 = por %p178, %p179
      %p182 = scmp.ne.s32.totalorder %s165, %s181
      %p183 = scmp.eq.s32.totalorder %s27, 0
      %p184 = por %p182, %p183
      %s185 = ssub.s32 %s21, %s28
      %p186 = scmp.eq.s32.totalorder %s185, 0
      %s188 = sadd.s32 %s187, 1
      %s189 = scalar_select %p186, %s187, %s188
      %p192 = pneg %p186
      %p193 = scmp.eq.s32.totalorder %s21, 1
      %p194 = por %p192, %p193
      %p195 = scmp.ne.s32.totalorder %s187, %s190
      %p196 = scmp.eq.s32.totalorder %s21, 0
      %p197 = por %p195, %p196
      %p198 = scmp.ne.s32.totalorder %s187, %s190
      %p199 = scmp.eq.s32.totalorder %s26, 1
      %p200 = por %p198, %p199
      %p201 = scmp.ne.s32.totalorder %s190, %s191
      %p202 = scmp.eq.s32.totalorder %s26, 0
      %p203 = por %p201, %p202
      %p204 = scmp.ne.s32.totalorder %s190, %s191
      %p205 = scmp.eq.s32.totalorder %s27, 1
      %p206 = por %p204, %p205
      %p208 = scmp.ne.s32.totalorder %s191, %s207
      %p209 = scmp.eq.s32.totalorder %s27, 0
      %p210 = por %p208, %p209
      %p211 = scmp.le.s32.totalorder 1, %s21
      %p212 = scmp.lt.s32.totalorder %s21, 3
      %p213 = pnand %p211, %p212
      %p214 = pneg %p213
      // Predicated region
      $region9: #{tpu_custom_call.1} parent=5 // pred_check
        _
      $region10: #{tpu_custom_call.1} parent=5 // pred_check_branch
        %216 = sbr.rel (%p213) target = $region12
      $region11: #{tpu_custom_call.1} parent=5 // pred_region
        %s217 = ssub.s32 %s21, 1
      $region12: #{tpu_custom_call.1} parent=5 // pred_fallthru
        _
      %p218 = scmp.lt.s32.totalorder %s21, 2
      // Predicated region
      $region13: #{tpu_custom_call.1} parent=5 // pred_check
        %p219 = pneg %p218
      $region14: #{tpu_custom_call.1} parent=5 // pred_check_branch
        %221 = sbr.rel (%p219) target = $region16
      $region15: #{tpu_custom_call.1} parent=5 // pred_region
        // Predicated region
        $region17: #{tpu_custom_call.1} parent=15 // pred_check
          %p222 = pneg %p41
        $region18: #{tpu_custom_call.1} parent=15 // pred_check_branch
          %224 = sbr.rel (%p222) target = $region20
        $region19: #{tpu_custom_call.1} parent=15 // pred_region
          %p225 = scmp.lt.s32.totalorder %s21, 1
          %s226 = scalar_select %p225, %s21, 1
          %s227 = smul.addr %s226, 8
          %s228 = smul.addr %s227, 8
          %s229 = scalar_lea.vmem %s0, %s228
        $region20: #{tpu_custom_call.1} parent=15 // pred_fallthru
          _
        // Predicated region
        $region21: #{tpu_custom_call.1} parent=15 // pred_check
          %p230 = pneg %p67
        $region22: #{tpu_custom_call.1} parent=15 // pred_check_branch
          %232 = sbr.rel (%p230) target = $region24
        $region23: #{tpu_custom_call.1} parent=15 // pred_region
          %s233 = sand.u32 %s57, 1
          %s234 = scalar_lea.sflag [#allocation3], %s233
          %s235 = sand.u32 %s57, 1
          %s236 = smul.addr %s235, 8
          %s237 = scalar_lea.vmem [#allocation2], %s236
          %s239 = ssub.s32 128, 128
          %240 = vsyncadd %s234, %s239
          %s241 = smul.addr %s21, 128
          %s242 = scalar_lea.hbm %s1, %s241
          %s244 = sshll.u32 %s237, 4
          %s245 = int_to_ptr.vmem [resolvable:$true] %s244
          %247 = dma.hbm_to_vmem [thread:$0]  %s242, 128, %s245, %s234
        $region24: #{tpu_custom_call.1} parent=15 // pred_fallthru
          _
        // Predicated region
        $region25: #{tpu_custom_call.1} parent=15 // pred_check
          %p248 = pneg %p93
        $region26: #{tpu_custom_call.1} parent=15 // pred_check_branch
          %250 = sbr.rel (%p248) target = $region28
        $region27: #{tpu_custom_call.1} parent=15 // pred_region
          %p251 = scmp.lt.s32.totalorder %s21, 1
          %s252 = scalar_select %p251, %s21, 1
          %s253 = smul.addr %s252, 12
          %s254 = smul.addr %s253, 8
          %s255 = scalar_lea.vmem %s2, %s254
        $region28: #{tpu_custom_call.1} parent=15 // pred_fallthru
          _
        // Predicated region
        $region29: #{tpu_custom_call.1} parent=15 // pred_check
          %p256 = pneg %p119
        $region30: #{tpu_custom_call.1} parent=15 // pred_check_branch
          %258 = sbr.rel (%p256) target = $region32
        $region31: #{tpu_custom_call.1} parent=15 // pred_region
          %s259 = sand.u32 %s21, 1
          %s260 = scalar_lea.sflag [#allocation6], %s259
          %s261 = sand.u32 %s109, 1
          %s262 = smul.addr %s261, 384
          %s263 = scalar_lea.vmem [#allocation5], %s262
          %s265 = ssub.s32 6144, 6144
          %266 = vsyncadd %s260, %s265
          %s267 = smul.addr %s21, 48
          %s268 = smul.addr %s267, 128
          %s269 = scalar_lea.hbm %s3, %s268
          %s270 = sshll.u32 %s263, 4
          %s271 = int_to_ptr.vmem [resolvable:$true] %s270
          %276 = dma.hbm_to_vmem [thread:$0]  %s269, 6144, %s271, %s260, 384, 384, 24
        $region32: #{tpu_custom_call.1} parent=15 // pred_fallthru
          _
        // Predicated region
        $region33: #{tpu_custom_call.1} parent=15 // pred_check
          %p277 = pneg %p145
        $region34: #{tpu_custom_call.1} parent=15 // pred_check_branch
          %279 = sbr.rel (%p277) target = $region36
        $region35: #{tpu_custom_call.1} parent=15 // pred_region
          %p280 = scmp.lt.s32.totalorder %s21, 1
          %s281 = scalar_select %p280, %s21, 1
          %s282 = smul.addr %s281, 3
          %s283 = scalar_lea.vmem %s4, %s282
        $region36: #{tpu_custom_call.1} parent=15 // pred_fallthru
          _
        // Predicated region
        $region37: #{tpu_custom_call.1} parent=15 // pred_check
          %p284 = pneg %p171
        $region38: #{tpu_custom_call.1} parent=15 // pred_check_branch
          %286 = sbr.rel (%p284) target = $region40
        $region39: #{tpu_custom_call.1} parent=15 // pred_region
          %s287 = sand.u32 %s21, 1
          %s288 = scalar_lea.sflag [#allocation6], %s287
          %s289 = sand.u32 %s161, 1
          %s290 = smul.addr %s289, 3
          %s291 = scalar_lea.vmem [#allocation7], %s290
          %s293 = ssub.s32 48, 48
          %294 = vsyncadd %s288, %s293
          %s295 = smul.addr %s21, 3
          %s296 = smul.addr %s295, 16
          %s297 = scalar_lea.hbm %s5, %s296
          %s299 = sshll.u32 %s291, 4
          %s300 = int_to_ptr.vmem [resolvable:$true] %s299
          %302 = dma.hbm_to_vmem [thread:$0]  %s297, 48, %s300, %s288
        $region40: #{tpu_custom_call.1} parent=15 // pred_fallthru
          _
      $region16: #{tpu_custom_call.1} parent=5 // pred_fallthru
        _
      %p303 = scmp.le.s32.totalorder 1, %s21
      %p304 = scmp.lt.s32.totalorder %s21, 3
      %p305 = pnand %p303, %p304
      %p306 = pneg %p305
      // Predicated region
      $region41: #{tpu_custom_call.1} parent=5 // pred_check
        _
      $region42: #{tpu_custom_call.1} parent=5 // pred_check_branch
        %308 = sbr.rel (%p305) target = $region44
      $region43: #{tpu_custom_call.1} parent=5 // pred_region
        %s309 = ssub.s32 %s21, 1
        %s310 = sand.u32 %s60, 1
        %s311 = scalar_lea.sflag [#allocation3], %s310
        %s312 = sand.u32 %s60, 1
        %s313 = smul.addr %s312, 8
        %s314 = scalar_lea.vmem [#allocation2], %s313
        // Predicated region
        $region45: #{tpu_custom_call.1} parent=43 // pred_check
          %p315 = pneg %p73
        $region46: #{tpu_custom_call.1} parent=43 // pred_check_branch
          %317 = sbr.rel (%p315) target = $region48
        $region47: #{tpu_custom_call.1} parent=43 // pred_region
          %318 = dma.done %s311, 128
        $region48: #{tpu_custom_call.1} parent=43 // pred_fallthru
          _
        %s319 = sand.u32 %s26, 1
        %s320 = scalar_lea.sflag [#allocation6], %s319
        %s321 = sand.u32 %s112, 1
        %s322 = smul.addr %s321, 384
        %s323 = scalar_lea.vmem [#allocation5], %s322
        // Predicated region
        $region49: #{tpu_custom_call.1} parent=43 // pred_check
          %p324 = pneg %p125
        $region50: #{tpu_custom_call.1} parent=43 // pred_check_branch
          %326 = sbr.rel (%p324) target = $region52
        $region51: #{tpu_custom_call.1} parent=43 // pred_region
          %327 = dma.done %s320, 6144
        $region52: #{tpu_custom_call.1} parent=43 // pred_fallthru
          _
        %s328 = sand.u32 %s26, 1
        %s329 = scalar_lea.sflag [#allocation6], %s328
        %s330 = sand.u32 %s164, 1
        %s331 = smul.addr %s330, 3
        %s332 = scalar_lea.vmem [#allocation7], %s331
        // Predicated region
        $region53: #{tpu_custom_call.1} parent=43 // pred_check
          %p333 = pneg %p177
        $region54: #{tpu_custom_call.1} parent=43 // pred_check_branch
          %335 = sbr.rel (%p333) target = $region56
        $region55: #{tpu_custom_call.1} parent=43 // pred_region
          %336 = dma.done %s329, 48
        $region56: #{tpu_custom_call.1} parent=43 // pred_fallthru
          _
        %p337 = scmp.lt.s32.totalorder %s26, 1
        %s338 = scalar_select %p337, %s26, 1
        %s339 = smul.addr %s338, 8
        %s340 = smul.addr %s339, 8
        %s341 = scalar_lea.vmem %s0, %s340
        %p342 = pneg %p47
        %p343 = pneg %p44
        %s344 = sand.u32 %s60, 1
        %s345 = scalar_lea.sflag [#allocation3], %s344
        %s346 = sand.u32 %s60, 1
        %s347 = smul.addr %s346, 8
        %s348 = scalar_lea.vmem [#allocation2], %s347
        %p349 = pneg %p73
        %p350 = pneg %p70
        %p351 = scmp.lt.s32.totalorder %s26, 1
        %s352 = scalar_select %p351, %s26, 1
        %s353 = smul.addr %s352, 12
        %s354 = smul.addr %s353, 8
        %s355 = scalar_lea.vmem %s2, %s354
        %p356 = pneg %p99
        %p357 = pneg %p96
        %s358 = sand.u32 %s26, 1
        %s359 = scalar_lea.sflag [#allocation6], %s358
        %s360 = sand.u32 %s112, 1
        %s361 = smul.addr %s360, 384
        %s362 = scalar_lea.vmem [#allocation5], %s361
        %p363 = pneg %p125
        %p364 = pneg %p122
        %p365 = scmp.lt.s32.totalorder %s26, 1
        %s366 = scalar_select %p365, %s26, 1
        %s367 = smul.addr %s366, 3
        %s368 = scalar_lea.vmem %s4, %s367
        %p369 = pneg %p151
        %p370 = pneg %p148
        %s371 = sand.u32 %s26, 1
        %s372 = scalar_lea.sflag [#allocation6], %s371
        %s373 = sand.u32 %s164, 1
        %s374 = smul.addr %s373, 3
        %s375 = scalar_lea.vmem [#allocation7], %s374
        %p376 = pneg %p177
        %p377 = pneg %p174
        %p378 = pneg %p203
        %p379 = pneg %p200
        %s380 = sand.u32 %s190, 1
        %s381 = scalar_lea.sflag [#allocation4], %s380
        %s382 = sand.u32 %s190, 1
        %s383 = smul.addr %s382, 8
        %s384 = scalar_lea.vmem [#allocation8], %s383
        %p385 = scmp.lt.s32.totalorder %s26, 1
        %s386 = scalar_select %p385, %s26, 1
        %s387 = smul.addr %s386, 8
        %s388 = smul.addr %s387, 8
        %s389 = scalar_lea.vmem %s0, %s388
        %p390 = scmp.lt.s32.totalorder %s26, 1
        %s391 = scalar_select %p390, %s26, 1
        %s392 = smul.addr %s391, 12
        %s393 = smul.addr %s392, 8
        %s394 = scalar_lea.vmem %s2, %s393
        %p395 = scmp.lt.s32.totalorder %s26, 1
        %s396 = scalar_select %p395, %s26, 1
        %s397 = smul.addr %s396, 3
        %s398 = scalar_lea.vmem %s4, %s397
        %v399 = vld [vmem:[%s323] sm:$0xff]
        %v400 = vld [vmem:[%s323 + $0x8] sm:$0xff]
        %v401 = vld [vmem:[%s323 + $0x10] sm:$0xff]
        %v402 = vld [vmem:[%s323 + $0x18] sm:$0xff]
        %v403 = vld [vmem:[%s323 + $0x20] sm:$0xff]
        %v404 = vld [vmem:[%s323 + $0x28] sm:$0xff]
        %v405 = vld [vmem:[%s323 + $0x30] sm:$0xff]
        %v406 = vld [vmem:[%s323 + $0x38] sm:$0xff]
        %v407 = vld [vmem:[%s323 + $0x40] sm:$0xff]
        %v408 = vld [vmem:[%s323 + $0x48] sm:$0xff]
        %v409 = vld [vmem:[%s323 + $0x50] sm:$0xff]
        %v410 = vld [vmem:[%s323 + $0x58] sm:$0xff]
        %v411 = vld [vmem:[%s323 + $0x60] sm:$0xff]
        %v412 = vld [vmem:[%s323 + $0x68] sm:$0xff]
        %v413 = vld [vmem:[%s323 + $0x70] sm:$0xff]
        %v414 = vld [vmem:[%s323 + $0x78] sm:$0xff]
        %v415 = vld [vmem:[%s323 + $0x80] sm:$0xff]
        %v416 = vld [vmem:[%s323 + $0x88] sm:$0xff]
        %v417 = vld [vmem:[%s323 + $0x90] sm:$0xff]
        %v418 = vld [vmem:[%s323 + $0x98] sm:$0xff]
        %v419 = vld [vmem:[%s323 + $0xa0] sm:$0xff]
        %v420 = vld [vmem:[%s323 + $0xa8] sm:$0xff]
        %v421 = vld [vmem:[%s323 + $0xb0] sm:$0xff]
        %v422 = vld [vmem:[%s323 + $0xb8] sm:$0xff]
        %v423 = vld [vmem:[%s323 + $0xc0] sm:$0xff]
        %v424 = vld [vmem:[%s323 + $0xc8] sm:$0xff]
        %v425 = vld [vmem:[%s323 + $0xd0] sm:$0xff]
        %v426 = vld [vmem:[%s323 + $0xd8] sm:$0xff]
        %v427 = vld [vmem:[%s323 + $0xe0] sm:$0xff]
        %v428 = vld [vmem:[%s323 + $0xe8] sm:$0xff]
        %v429 = vld [vmem:[%s323 + $0xf0] sm:$0xff]
        %v430 = vld [vmem:[%s323 + $0xf8] sm:$0xff]
        %v431 = vld [vmem:[%s323 + $0x100] sm:$0xff]
        %v432 = vld [vmem:[%s323 + $0x108] sm:$0xff]
        %v433 = vld [vmem:[%s323 + $0x110] sm:$0xff]
        %v434 = vld [vmem:[%s323 + $0x118] sm:$0xff]
        %v435 = vld [vmem:[%s323 + $0x120] sm:$0xff]
        %v436 = vld [vmem:[%s323 + $0x128] sm:$0xff]
        %v437 = vld [vmem:[%s323 + $0x130] sm:$0xff]
        %v438 = vld [vmem:[%s323 + $0x138] sm:$0xff]
        %v439 = vld [vmem:[%s323 + $0x140] sm:$0xff]
        %v440 = vld [vmem:[%s323 + $0x148] sm:$0xff]
        %v441 = vld [vmem:[%s323 + $0x150] sm:$0xff]
        %v442 = vld [vmem:[%s323 + $0x158] sm:$0xff]
        %v443 = vld [vmem:[%s323 + $0x160] sm:$0xff]
        %v444 = vld [vmem:[%s323 + $0x168] sm:$0xff]
        %v445 = vld [vmem:[%s323 + $0x170] sm:$0xff]
        %v446 = vld [vmem:[%s323 + $0x178] sm:$0xff]
        %v447 = vld [vmem:[%s332] sm:$0x7]
        %v448 = vld [vmem:[%s314] sm:$0xff]
        %v449 = vld [vmem:[%s389] sm:$0xff]
        %v450 = vld [vmem:[%s389 + $0x8] sm:$0xff]
        %v451 = vld [vmem:[%s389 + $0x10] sm:$0xff]
        %v452 = vld [vmem:[%s389 + $0x18] sm:$0xff]
        %v453 = vld [vmem:[%s389 + $0x20] sm:$0xff]
        %v454 = vld [vmem:[%s389 + $0x28] sm:$0xff]
        %v455 = vld [vmem:[%s389 + $0x30] sm:$0xff]
        %v456 = vld [vmem:[%s389 + $0x38] sm:$0xff]
        %v457 = vld [vmem:[%s394] sm:$0xff]
        %v458 = vld [vmem:[%s394 + $0x8] sm:$0xff]
        %v459 = vld [vmem:[%s394 + $0x10] sm:$0xff]
        %v460 = vld [vmem:[%s394 + $0x18] sm:$0xff]
        %v461 = vld [vmem:[%s394 + $0x20] sm:$0xff]
        %v462 = vld [vmem:[%s394 + $0x28] sm:$0xff]
        %v463 = vld [vmem:[%s394 + $0x30] sm:$0xff]
        %v464 = vld [vmem:[%s394 + $0x38] sm:$0xff]
        %v465 = vld [vmem:[%s394 + $0x40] sm:$0xff]
        %v466 = vld [vmem:[%s394 + $0x48] sm:$0xff]
        %v467 = vld [vmem:[%s394 + $0x50] sm:$0xff]
        %v468 = vld [vmem:[%s394 + $0x58] sm:$0xff]
        %v469 = vld [vmem:[%s398] sm:$0x7]
        %v471 = vlaneseq
        %v472 = vshrl.u32 %v471, 7
        %v473 = vsub.s32 0, %v472
        %v474 = vrot.slane %v469, %v473
        %v475 = vlaneseq
        %v476 = vshrl.u32 %v475, 7
        %v477 = vsub.s32 1, %v476
        %v478 = vrot.slane %v469, %v477
        %v479 = vlaneseq
        %v480 = vshrl.u32 %v479, 7
        %v481 = vsub.s32 2, %v480
        %v482 = vrot.slane %v469, %v481
        %vm486 = vcmask 261120
        %v488 = vsel %vm486, %v449, 0
        %v491 = vsel %vm486, %v450, 0
        %v494 = vsel %vm486, %v451, 0
        %v497 = vsel %vm486, %v452, 0
        %v500 = vsel %vm486, %v453, 0
        %v503 = vsel %vm486, %v454, 0
        %v506 = vsel %vm486, %v455, 0
        %v509 = vsel %vm486, %v456, 0
        %511 = vmatprep.subr.mxu0 0.0
        %512 = vmatpush1.msra.mxu0 0.0
        %513 = vmatprep.subr.mxu0 0.0
        %514 = vmatpush1.msra.mxu0 0.0
        %515 = vmatprep.subr.mxu0 0.0
        %516 = vmatpush1.msra.mxu0 0.0
        %517 = vmatprep.subr.mxu0 0.0
        %518 = vmatpush1.msra.mxu0 0.0
        %519 = vmatprep.subr.mxu0 0.0
        %520 = vmatpush1.msra.mxu0 0.0
        %521 = vmatprep.subr.mxu0 0.0
        %522 = vmatpush1.msra.mxu0 0.0
        %523 = vmatprep.subr.mxu0 0.0
        %524 = vmatpush1.msra.mxu0 0.0
        %525 = vmatprep.subr.mxu0 0.0
        %526 = vmatpush1.msra.mxu0 0.0
        %527 = vmatprep.subr.mxu0 0.0
        %528 = vmatpush1.msra.mxu0 0.0
        %529 = vmatprep.subr.mxu0 0.0
        %530 = vmatpush1.msra.mxu0 0.0
        %531 = vmatprep.subr.mxu0 0.0
        %532 = vmatpush1.msra.mxu0 0.0
        %533 = vmatprep.subr.mxu0 0.0
        %534 = vmatpush1.msra.mxu0 0.0
        %535 = vmatprep.subr.mxu0 %v467
        %536 = vmatpush1.msra.mxu0 %v466
        %537 = vmatprep.subr.mxu0 %v464
        %538 = vmatpush1.msra.mxu0 %v463
        %539 = vmatprep.subr.mxu0 %v461
        %540 = vmatpush1.msra.mxu0 %v460
        %541 = vmatprep.subr.mxu0 %v458
        %542 = vmatpush1.msra.mxu0 %v457
        %543 = vmatprep.subr.mxu0 0.0
        %544 = vmatpush2.msra.mxu0 0.0
        %545 = vmatprep.subr.mxu0 0.0
        %546 = vmatpush2.msra.mxu0 0.0
        %547 = vmatprep.subr.mxu0 0.0
        %548 = vmatpush2.msra.mxu0 0.0
        %549 = vmatprep.subr.mxu0 0.0
        %550 = vmatpush2.msra.mxu0 0.0
        %551 = vmatprep.subr.mxu0 0.0
        %552 = vmatpush2.msra.mxu0 0.0
        %553 = vmatprep.subr.mxu0 0.0
        %554 = vmatpush2.msra.mxu0 0.0
        %555 = vmatprep.subr.mxu0 0.0
        %556 = vmatpush2.msra.mxu0 0.0
        %557 = vmatprep.subr.mxu0 0.0
        %558 = vmatpush2.msra.mxu0 0.0
        %559 = vmatprep.subr.mxu0 0.0
        %560 = vmatpush2.msra.mxu0 0.0
        %561 = vmatprep.subr.mxu0 0.0
        %562 = vmatpush2.msra.mxu0 0.0
        %563 = vmatprep.subr.mxu0 0.0
        %564 = vmatpush2.msra.mxu0 0.0
        %565 = vmatprep.subr.mxu0 0.0
        %566 = vmatpush2.msra.mxu0 0.0
        %567 = vmatprep.subr.mxu0 0.0
        %568 = vmatpush2.msra.mxu0 0.0
        %569 = vmatprep.subr.mxu0 0.0
        %570 = vmatpush2.msra.mxu0 0.0
        %571 = vmatprep.subr.mxu0 0.0
        %572 = vmatpush2.msra.mxu0 0.0
        %573 = vmatprep.subr.mxu0 0.0
        %574 = vmatpush2.msra.mxu0 0.0
        %575 = vmatprep.mubr.f32.mxu0 0.0
        %576 = vmatmul.mubr.f32.gmra.mxu0 %v488
        %v577 = vpop.f32.mrf.mxu0
        %v578 = vadd.f32 %v474, %v577
        %v579 = vpop.f32.mrf.mxu0
        %v580 = vadd.f32 %v478, %v579
        %581 = vmatprep.mubr.f32.mxu0 0.0
        %582 = vmatmul.mubr.f32.gmra.mxu0 %v491
        %v583 = vpop.f32.mrf.mxu0
        %v584 = vadd.f32 %v474, %v583
        %v585 = vpop.f32.mrf.mxu0
        %v586 = vadd.f32 %v478, %v585
        %587 = vmatprep.mubr.f32.mxu0 0.0
        %588 = vmatmul.mubr.f32.gmra.mxu0 %v494
        %v589 = vpop.f32.mrf.mxu0
        %v590 = vadd.f32 %v474, %v589
        %v591 = vpop.f32.mrf.mxu0
        %v592 = vadd.f32 %v478, %v591
        %593 = vmatprep.mubr.f32.mxu0 0.0
        %594 = vmatmul.mubr.f32.gmra.mxu0 %v497
        %v595 = vpop.f32.mrf.mxu0
        %v596 = vadd.f32 %v474, %v595
        %v597 = vpop.f32.mrf.mxu0
        %v598 = vadd.f32 %v478, %v597
        %599 = vmatprep.mubr.f32.mxu0 0.0
        %600 = vmatmul.mubr.f32.gmra.mxu0 %v500
        %v601 = vpop.f32.mrf.mxu0
        %v602 = vadd.f32 %v474, %v601
        %v603 = vpop.f32.mrf.mxu0
        %v604 = vadd.f32 %v478, %v603
        %605 = vmatprep.mubr.f32.mxu0 0.0
        %606 = vmatmul.mubr.f32.gmra.mxu0 %v503
        %v607 = vpop.f32.mrf.mxu0
        %v608 = vadd.f32 %v474, %v607
        %v609 = vpop.f32.mrf.mxu0
        %v610 = vadd.f32 %v478, %v609
        %611 = vmatprep.mubr.f32.mxu0 0.0
        %612 = vmatmul.mubr.f32.gmra.mxu0 %v506
        %v613 = vpop.f32.mrf.mxu0
        %v614 = vadd.f32 %v474, %v613
        %v615 = vpop.f32.mrf.mxu0
        %v616 = vadd.f32 %v478, %v615
        %617 = vmatprep.mubr.f32.mxu0 0.0
        %618 = vmatmul.mubr.f32.gmra.mxu0 %v509
        %v619 = vpop.f32.mrf.mxu0
        %v620 = vadd.f32 %v474, %v619
        %v621 = vpop.f32.mrf.mxu0
        %v622 = vadd.f32 %v478, %v621
        %623 = vdwg.mxu0
        %624 = vmatprep.subr.mxu0 0.0
        %625 = vmatpush1.msra.mxu0 0.0
        %626 = vmatprep.subr.mxu0 0.0
        %627 = vmatpush1.msra.mxu0 0.0
        %628 = vmatprep.subr.mxu0 0.0
        %629 = vmatpush1.msra.mxu0 0.0
        %630 = vmatprep.subr.mxu0 0.0
        %631 = vmatpush1.msra.mxu0 0.0
        %632 = vmatprep.subr.mxu0 0.0
        %633 = vmatpush1.msra.mxu0 0.0
        %634 = vmatprep.subr.mxu0 0.0
        %635 = vmatpush1.msra.mxu0 0.0
        %636 = vmatprep.subr.mxu0 0.0
        %637 = vmatpush1.msra.mxu0 0.0
        %638 = vmatprep.subr.mxu0 0.0
        %639 = vmatpush1.msra.mxu0 0.0
        %640 = vmatprep.subr.mxu0 0.0
        %641 = vmatpush1.msra.mxu0 0.0
        %642 = vmatprep.subr.mxu0 0.0
        %643 = vmatpush1.msra.mxu0 0.0
        %644 = vmatprep.subr.mxu0 0.0
        %645 = vmatpush1.msra.mxu0 0.0
        %646 = vmatprep.subr.mxu0 0.0
        %647 = vmatpush1.msra.mxu0 0.0
        %648 = vmatprep.subr.mxu0 0.0
        %649 = vmatpush1.msra.mxu0 %v468
        %650 = vmatprep.subr.mxu0 0.0
        %651 = vmatpush1.msra.mxu0 %v465
        %652 = vmatprep.subr.mxu0 0.0
        %653 = vmatpush1.msra.mxu0 %v462
        %654 = vmatprep.subr.mxu0 0.0
        %655 = vmatpush1.msra.mxu0 %v459
        %656 = vmatprep.subr.mxu0 0.0
        %657 = vmatpush2.msra.mxu0 0.0
        %658 = vmatprep.subr.mxu0 0.0
        %659 = vmatpush2.msra.mxu0 0.0
        %660 = vmatprep.subr.mxu0 0.0
        %661 = vmatpush2.msra.mxu0 0.0
        %662 = vmatprep.subr.mxu0 0.0
        %663 = vmatpush2.msra.mxu0 0.0
        %664 = vmatprep.subr.mxu0 0.0
        %665 = vmatpush2.msra.mxu0 0.0
        %666 = vmatprep.subr.mxu0 0.0
        %667 = vmatpush2.msra.mxu0 0.0
        %668 = vmatprep.subr.mxu0 0.0
        %669 = vmatpush2.msra.mxu0 0.0
        %670 = vmatprep.subr.mxu0 0.0
        %671 = vmatpush2.msra.mxu0 0.0
        %672 = vmatprep.subr.mxu0 0.0
        %673 = vmatpush2.msra.mxu0 0.0
        %674 = vmatprep.subr.mxu0 0.0
        %675 = vmatpush2.msra.mxu0 0.0
        %676 = vmatprep.subr.mxu0 0.0
        %677 = vmatpush2.msra.mxu0 0.0
        %678 = vmatprep.subr.mxu0 0.0
        %679 = vmatpush2.msra.mxu0 0.0
        %680 = vmatprep.subr.mxu0 0.0
        %681 = vmatpush2.msra.mxu0 0.0
        %682 = vmatprep.subr.mxu0 0.0
        %683 = vmatpush2.msra.mxu0 0.0
        %684 = vmatprep.subr.mxu0 0.0
        %685 = vmatpush2.msra.mxu0 0.0
        %686 = vmatprep.subr.mxu0 0.0
        %687 = vmatpush2.msra.mxu0 0.0
        %688 = vmatprep.mubr.f32.mxu0 0.0
        %689 = vmatmul.mubr.f32.gmra.mxu0 %v488
        %v690 = vpop.f32.mrf.mxu0
        %v691 = vadd.f32 %v482, %v690
        %v692 = vpop.f32.mrf.mxu0
        %693 = vmatprep.mubr.f32.mxu0 0.0
        %694 = vmatmul.mubr.f32.gmra.mxu0 %v491
        %v695 = vpop.f32.mrf.mxu0
        %v696 = vadd.f32 %v482, %v695
        %v697 = vpop.f32.mrf.mxu0
        %698 = vmatprep.mubr.f32.mxu0 0.0
        %699 = vmatmul.mubr.f32.gmra.mxu0 %v494
        %v700 = vpop.f32.mrf.mxu0
        %v701 = vadd.f32 %v482, %v700
        %v702 = vpop.f32.mrf.mxu0
        %703 = vmatprep.mubr.f32.mxu0 0.0
        %704 = vmatmul.mubr.f32.gmra.mxu0 %v497
        %v705 = vpop.f32.mrf.mxu0
        %v706 = vadd.f32 %v482, %v705
        %v707 = vpop.f32.mrf.mxu0
        %708 = vmatprep.mubr.f32.mxu0 0.0
        %709 = vmatmul.mubr.f32.gmra.mxu0 %v500
        %v710 = vpop.f32.mrf.mxu0
        %v711 = vadd.f32 %v482, %v710
        %v712 = vpop.f32.mrf.mxu0
        %713 = vmatprep.mubr.f32.mxu0 0.0
        %714 = vmatmul.mubr.f32.gmra.mxu0 %v503
        %v715 = vpop.f32.mrf.mxu0
        %v716 = vadd.f32 %v482, %v715
        %v717 = vpop.f32.mrf.mxu0
        %718 = vmatprep.mubr.f32.mxu0 0.0
        %719 = vmatmul.mubr.f32.gmra.mxu0 %v506
        %v720 = vpop.f32.mrf.mxu0
        %v721 = vadd.f32 %v482, %v720
        %v722 = vpop.f32.mrf.mxu0
        %723 = vmatprep.mubr.f32.mxu0 0.0
        %724 = vmatmul.mubr.f32.gmra.mxu0 %v509
        %v725 = vpop.f32.mrf.mxu0
        %v726 = vadd.f32 %v482, %v725
        %v727 = vpop.f32.mrf.mxu0
        %728 = vdwg.mxu0
        %v730 = vlaneseq
        %v731 = vshrl.u32 %v730, 7
        %v732 = vsub.s32 0, %v731
        %v733 = vrot.slane %v447, %v732
        %v734 = vlaneseq
        %v735 = vshrl.u32 %v734, 7
        %v736 = vsub.s32 1, %v735
        %v737 = vrot.slane %v447, %v736
        %v738 = vlaneseq
        %v739 = vshrl.u32 %v738, 7
        %v740 = vsub.s32 2, %v739
        %v741 = vrot.slane %v447, %v740
        %745 = vmatprep.subr.mxu0 %v445
        %746 = vmatpush1.msra.mxu0 %v444
        %747 = vmatprep.subr.mxu0 %v442
        %748 = vmatpush1.msra.mxu0 %v441
        %749 = vmatprep.subr.mxu0 %v439
        %750 = vmatpush1.msra.mxu0 %v438
        %751 = vmatprep.subr.mxu0 %v436
        %752 = vmatpush1.msra.mxu0 %v435
        %753 = vmatprep.subr.mxu0 %v433
        %754 = vmatpush1.msra.mxu0 %v432
        %755 = vmatprep.subr.mxu0 %v430
        %756 = vmatpush1.msra.mxu0 %v429
        %757 = vmatprep.subr.mxu0 %v427
        %758 = vmatpush1.msra.mxu0 %v426
        %759 = vmatprep.subr.mxu0 %v424
        %760 = vmatpush1.msra.mxu0 %v423
        %761 = vmatprep.subr.mxu0 %v421
        %762 = vmatpush1.msra.mxu0 %v420
        %763 = vmatprep.subr.mxu0 %v418
        %764 = vmatpush1.msra.mxu0 %v417
        %765 = vmatprep.subr.mxu0 %v415
        %766 = vmatpush1.msra.mxu0 %v414
        %767 = vmatprep.subr.mxu0 %v412
        %768 = vmatpush1.msra.mxu0 %v411
        %769 = vmatprep.subr.mxu0 %v409
        %770 = vmatpush1.msra.mxu0 %v408
        %771 = vmatprep.subr.mxu0 %v406
        %772 = vmatpush1.msra.mxu0 %v405
        %773 = vmatprep.subr.mxu0 %v403
        %774 = vmatpush1.msra.mxu0 %v402
        %775 = vmatprep.subr.mxu0 %v400
        %776 = vmatpush1.msra.mxu0 %v399
        %777 = vmatprep.subr.mxu0 0.0
        %778 = vmatpush2.msra.mxu0 0.0
        %779 = vmatprep.subr.mxu0 0.0
        %780 = vmatpush2.msra.mxu0 0.0
        %781 = vmatprep.subr.mxu0 0.0
        %782 = vmatpush2.msra.mxu0 0.0
        %783 = vmatprep.subr.mxu0 0.0
        %784 = vmatpush2.msra.mxu0 0.0
        %785 = vmatprep.subr.mxu0 0.0
        %786 = vmatpush2.msra.mxu0 0.0
        %787 = vmatprep.subr.mxu0 0.0
        %788 = vmatpush2.msra.mxu0 0.0
        %789 = vmatprep.subr.mxu0 0.0
        %790 = vmatpush2.msra.mxu0 0.0
        %791 = vmatprep.subr.mxu0 0.0
        %792 = vmatpush2.msra.mxu0 0.0
        %793 = vmatprep.subr.mxu0 0.0
        %794 = vmatpush2.msra.mxu0 0.0
        %795 = vmatprep.subr.mxu0 0.0
        %796 = vmatpush2.msra.mxu0 0.0
        %797 = vmatprep.subr.mxu0 0.0
        %798 = vmatpush2.msra.mxu0 0.0
        %799 = vmatprep.subr.mxu0 0.0
        %800 = vmatpush2.msra.mxu0 0.0
        %801 = vmatprep.subr.mxu0 0.0
        %802 = vmatpush2.msra.mxu0 0.0
        %803 = vmatprep.subr.mxu0 0.0
        %804 = vmatpush2.msra.mxu0 0.0
        %805 = vmatprep.subr.mxu0 0.0
        %806 = vmatpush2.msra.mxu0 0.0
        %807 = vmatprep.subr.mxu0 0.0
        %808 = vmatpush2.msra.mxu0 0.0
        %809 = vmatprep.mubr.f32.mxu0 0.0
        %810 = vmatmul.mubr.f32.gmra.mxu0 0.0
        %v811 = vpop.f32.mrf.mxu0
        %v812 = vadd.f32 %v733, %v811
        %v813 = vpop.f32.mrf.mxu0
        %v814 = vadd.f32 %v737, %v813
        %815 = vdwg.mxu0
        %816 = vmatprep.subr.mxu0 0.0
        %817 = vmatpush1.msra.mxu0 %v446
        %818 = vmatprep.subr.mxu0 0.0
        %819 = vmatpush1.msra.mxu0 %v443
        %820 = vmatprep.subr.mxu0 0.0
        %821 = vmatpush1.msra.mxu0 %v440
        %822 = vmatprep.subr.mxu0 0.0
        %823 = vmatpush1.msra.mxu0 %v437
        %824 = vmatprep.subr.mxu0 0.0
        %825 = vmatpush1.msra.mxu0 %v434
        %826 = vmatprep.subr.mxu0 0.0
        %827 = vmatpush1.msra.mxu0 %v431
        %828 = vmatprep.subr.mxu0 0.0
        %829 = vmatpush1.msra.mxu0 %v428
        %830 = vmatprep.subr.mxu0 0.0
        %831 = vmatpush1.msra.mxu0 %v425
        %832 = vmatprep.subr.mxu0 0.0
        %833 = vmatpush1.msra.mxu0 %v422
        %834 = vmatprep.subr.mxu0 0.0
        %835 = vmatpush1.msra.mxu0 %v419
        %836 = vmatprep.subr.mxu0 0.0
        %837 = vmatpush1.msra.mxu0 %v416
        %838 = vmatprep.subr.mxu0 0.0
        %839 = vmatpush1.msra.mxu0 %v413
        %840 = vmatprep.subr.mxu0 0.0
        %841 = vmatpush1.msra.mxu0 %v410
        %842 = vmatprep.subr.mxu0 0.0
        %843 = vmatpush1.msra.mxu0 %v407
        %844 = vmatprep.subr.mxu0 0.0
        %845 = vmatpush1.msra.mxu0 %v404
        %846 = vmatprep.subr.mxu0 0.0
        %847 = vmatpush1.msra.mxu0 %v401
        %848 = vmatprep.subr.mxu0 0.0
        %849 = vmatpush2.msra.mxu0 0.0
        %850 = vmatprep.subr.mxu0 0.0
        %851 = vmatpush2.msra.mxu0 0.0
        %852 = vmatprep.subr.mxu0 0.0
        %853 = vmatpush2.msra.mxu0 0.0
        %854 = vmatprep.subr.mxu0 0.0
        %855 = vmatpush2.msra.mxu0 0.0
        %856 = vmatprep.subr.mxu0 0.0
        %857 = vmatpush2.msra.mxu0 0.0
        %858 = vmatprep.subr.mxu0 0.0
        %859 = vmatpush2.msra.mxu0 0.0
        %860 = vmatprep.subr.mxu0 0.0
        %861 = vmatpush2.msra.mxu0 0.0
        %862 = vmatprep.subr.mxu0 0.0
        %863 = vmatpush2.msra.mxu0 0.0
        %864 = vmatprep.subr.mxu0 0.0
        %865 = vmatpush2.msra.mxu0 0.0
        %866 = vmatprep.subr.mxu0 0.0
        %867 = vmatpush2.msra.mxu0 0.0
        %868 = vmatprep.subr.mxu0 0.0
        %869 = vmatpush2.msra.mxu0 0.0
        %870 = vmatprep.subr.mxu0 0.0
        %871 = vmatpush2.msra.mxu0 0.0
        %872 = vmatprep.subr.mxu0 0.0
        %873 = vmatpush2.msra.mxu0 0.0
        %874 = vmatprep.subr.mxu0 0.0
        %875 = vmatpush2.msra.mxu0 0.0
        %876 = vmatprep.subr.mxu0 0.0
        %877 = vmatpush2.msra.mxu0 0.0
        %878 = vmatprep.subr.mxu0 0.0
        %879 = vmatpush2.msra.mxu0 0.0
        %880 = vmatprep.mubr.f32.mxu0 0.0
        %881 = vmatmul.mubr.f32.gmra.mxu0 0.0
        %v882 = vpop.f32.mrf.mxu0
        %v883 = vadd.f32 %v741, %v882
        %v884 = vpop.f32.mrf.mxu0
        %885 = vdwg.mxu0
        %v886 = vadd.f32 %v578, %v812
        %v887 = vxor.u32 %v886, 2147483648
        %v888 = vmul.f32 %v887, 1.442695
        %v889 = vpow.pop %v888
        %v890 = vadd.f32 %v889, 1.0
        %v891 = vrcp.pop %v890
        %v892 = vmul.f32 1.0, %v891
        %v893 = vadd.f32 %v580, %v814
        %v894 = vxor.u32 %v893, 2147483648
        %v895 = vmul.f32 %v894, 1.442695
        %v896 = vpow.pop %v895
        %v897 = vadd.f32 %v896, 1.0
        %v898 = vrcp.pop %v897
        %v899 = vmul.f32 1.0, %v898
        %v900 = vmul.f32 %v892, %v883
        %v901 = vadd.f32 %v691, %v900
        %v902 = vtanh.pop %v901
        %v903 = vsub.f32 1.0, %v899
        %v904 = vmul.f32 %v903, %v902
        %v905 = vmul.f32 %v899, 0.0
        %v906 = vadd.f32 %v904, %v905
        %908 = vset.pattern.permute.xlu0 0
        %909 = vperm.xlu0 %908, %v448
        %v910 = vpop.permute.xlu0 %909
        %v912 = vmul.f32 %v910, %v906
        %v913 = vadd.f32 %v912, 0.0
        %914 = vmatprep.subr.mxu0 %v445
        %915 = vmatpush1.msra.mxu0 %v444
        %916 = vmatprep.subr.mxu0 %v442
        %917 = vmatpush1.msra.mxu0 %v441
        %918 = vmatprep.subr.mxu0 %v439
        %919 = vmatpush1.msra.mxu0 %v438
        %920 = vmatprep.subr.mxu0 %v436
        %921 = vmatpush1.msra.mxu0 %v435
        %922 = vmatprep.subr.mxu0 %v433
        %923 = vmatpush1.msra.mxu0 %v432
        %924 = vmatprep.subr.mxu0 %v430
        %925 = vmatpush1.msra.mxu0 %v429
        %926 = vmatprep.subr.mxu0 %v427
        %927 = vmatpush1.msra.mxu0 %v426
        %928 = vmatprep.subr.mxu0 %v424
        %929 = vmatpush1.msra.mxu0 %v423
        %930 = vmatprep.subr.mxu0 %v421
        %931 = vmatpush1.msra.mxu0 %v420
        %932 = vmatprep.subr.mxu0 %v418
        %933 = vmatpush1.msra.mxu0 %v417
        %934 = vmatprep.subr.mxu0 %v415
        %935 = vmatpush1.msra.mxu0 %v414
        %936 = vmatprep.subr.mxu0 %v412
        %937 = vmatpush1.msra.mxu0 %v411
        %938 = vmatprep.subr.mxu0 %v409
        %939 = vmatpush1.msra.mxu0 %v408
        %940 = vmatprep.subr.mxu0 %v406
        %941 = vmatpush1.msra.mxu0 %v405
        %942 = vmatprep.subr.mxu0 %v403
        %943 = vmatpush1.msra.mxu0 %v402
        %944 = vmatprep.subr.mxu0 %v400
        %945 = vmatpush1.msra.mxu0 %v399
        %946 = vmatprep.subr.mxu0 0.0
        %947 = vmatpush2.msra.mxu0 0.0
        %948 = vmatprep.subr.mxu0 0.0
        %949 = vmatpush2.msra.mxu0 0.0
        %950 = vmatprep.subr.mxu0 0.0
        %951 = vmatpush2.msra.mxu0 0.0
        %952 = vmatprep.subr.mxu0 0.0
        %953 = vmatpush2.msra.mxu0 0.0
        %954 = vmatprep.subr.mxu0 0.0
        %955 = vmatpush2.msra.mxu0 0.0
        %956 = vmatprep.subr.mxu0 0.0
        %957 = vmatpush2.msra.mxu0 0.0
        %958 = vmatprep.subr.mxu0 0.0
        %959 = vmatpush2.msra.mxu0 0.0
        %960 = vmatprep.subr.mxu0 0.0
        %961 = vmatpush2.msra.mxu0 0.0
        %962 = vmatprep.subr.mxu0 0.0
        %963 = vmatpush2.msra.mxu0 0.0
        %964 = vmatprep.subr.mxu0 0.0
        %965 = vmatpush2.msra.mxu0 0.0
        %966 = vmatprep.subr.mxu0 0.0
        %967 = vmatpush2.msra.mxu0 0.0
        %968 = vmatprep.subr.mxu0 0.0
        %969 = vmatpush2.msra.mxu0 0.0
        %970 = vmatprep.subr.mxu0 0.0
        %971 = vmatpush2.msra.mxu0 0.0
        %972 = vmatprep.subr.mxu0 0.0
        %973 = vmatpush2.msra.mxu0 0.0
        %974 = vmatprep.subr.mxu0 0.0
        %975 = vmatpush2.msra.mxu0 0.0
        %976 = vmatprep.subr.mxu0 0.0
        %977 = vmatpush2.msra.mxu0 0.0
        %978 = vmatprep.mubr.f32.mxu0 0.0
        %979 = vmatmul.mubr.f32.gmra.mxu0 %v906
        %v980 = vpop.f32.mrf.mxu0
        %v981 = vadd.f32 %v733, %v980
        %v982 = vpop.f32.mrf.mxu0
        %v983 = vadd.f32 %v737, %v982
        %984 = vdwg.mxu0
        %985 = vmatprep.subr.mxu0 0.0
        %986 = vmatpush1.msra.mxu0 %v446
        %987 = vmatprep.subr.mxu0 0.0
        %988 = vmatpush1.msra.mxu0 %v443
        %989 = vmatprep.subr.mxu0 0.0
        %990 = vmatpush1.msra.mxu0 %v440
        %991 = vmatprep.subr.mxu0 0.0
        %992 = vmatpush1.msra.mxu0 %v437
        %993 = vmatprep.subr.mxu0 0.0
        %994 = vmatpush1.msra.mxu0 %v434
        %995 = vmatprep.subr.mxu0 0.0
        %996 = vmatpush1.msra.mxu0 %v431
        %997 = vmatprep.subr.mxu0 0.0
        %998 = vmatpush1.msra.mxu0 %v428
        %999 = vmatprep.subr.mxu0 0.0
        %1000 = vmatpush1.msra.mxu0 %v425
        %1001 = vmatprep.subr.mxu0 0.0
        %1002 = vmatpush1.msra.mxu0 %v422
        %1003 = vmatprep.subr.mxu0 0.0
        %1004 = vmatpush1.msra.mxu0 %v419
        %1005 = vmatprep.subr.mxu0 0.0
        %1006 = vmatpush1.msra.mxu0 %v416
        %1007 = vmatprep.subr.mxu0 0.0
        %1008 = vmatpush1.msra.mxu0 %v413
        %1009 = vmatprep.subr.mxu0 0.0
        %1010 = vmatpush1.msra.mxu0 %v410
        %1011 = vmatprep.subr.mxu0 0.0
        %1012 = vmatpush1.msra.mxu0 %v407
        %1013 = vmatprep.subr.mxu0 0.0
        %1014 = vmatpush1.msra.mxu0 %v404
        %1015 = vmatprep.subr.mxu0 0.0
        %1016 = vmatpush1.msra.mxu0 %v401
        %1017 = vmatprep.subr.mxu0 0.0
        %1018 = vmatpush2.msra.mxu0 0.0
        %1019 = vmatprep.subr.mxu0 0.0
        %1020 = vmatpush2.msra.mxu0 0.0
        %1021 = vmatprep.subr.mxu0 0.0
        %1022 = vmatpush2.msra.mxu0 0.0
        %1023 = vmatprep.subr.mxu0 0.0
        %1024 = vmatpush2.msra.mxu0 0.0
        %1025 = vmatprep.subr.mxu0 0.0
        %1026 = vmatpush2.msra.mxu0 0.0
        %1027 = vmatprep.subr.mxu0 0.0
        %1028 = vmatpush2.msra.mxu0 0.0
        %1029 = vmatprep.subr.mxu0 0.0
        %1030 = vmatpush2.msra.mxu0 0.0
        %1031 = vmatprep.subr.mxu0 0.0
        %1032 = vmatpush2.msra.mxu0 0.0
        %1033 = vmatprep.subr.mxu0 0.0
        %1034 = vmatpush2.msra.mxu0 0.0
        %1035 = vmatprep.subr.mxu0 0.0
        %1036 = vmatpush2.msra.mxu0 0.0
        %1037 = vmatprep.subr.mxu0 0.0
        %1038 = vmatpush2.msra.mxu0 0.0
        %1039 = vmatprep.subr.mxu0 0.0
        %1040 = vmatpush2.msra.mxu0 0.0
        %1041 = vmatprep.subr.mxu0 0.0
        %1042 = vmatpush2.msra.mxu0 0.0
        %1043 = vmatprep.subr.mxu0 0.0
        %1044 = vmatpush2.msra.mxu0 0.0
        %1045 = vmatprep.subr.mxu0 0.0
        %1046 = vmatpush2.msra.mxu0 0.0
        %1047 = vmatprep.subr.mxu0 0.0
        %1048 = vmatpush2.msra.mxu0 0.0
        %1049 = vmatprep.mubr.f32.mxu0 0.0
        %1050 = vmatmul.mubr.f32.gmra.mxu0 %v906
        %v1051 = vpop.f32.mrf.mxu0
        %v1052 = vadd.f32 %v741, %v1051
        %v1053 = vpop.f32.mrf.mxu0
        %1054 = vdwg.mxu0
        %v1055 = vadd.f32 %v584, %v981
        %v1056 = vxor.u32 %v1055, 2147483648
        %v1057 = vmul.f32 %v1056, 1.442695
        %v1058 = vpow.pop %v1057
        %v1059 = vadd.f32 %v1058, 1.0
        %v1060 = vrcp.pop %v1059
        %v1061 = vmul.f32 1.0, %v1060
        %v1062 = vadd.f32 %v586, %v983
        %v1063 = vxor.u32 %v1062, 2147483648
        %v1064 = vmul.f32 %v1063, 1.442695
        %v1065 = vpow.pop %v1064
        %v1066 = vadd.f32 %v1065, 1.0
        %v1067 = vrcp.pop %v1066
        %v1068 = vmul.f32 1.0, %v1067
        %v1069 = vmul.f32 %v1061, %v1052
        %v1070 = vadd.f32 %v696, %v1069
        %v1071 = vtanh.pop %v1070
        %v1072 = vsub.f32 1.0, %v1068
        %v1073 = vmul.f32 %v1072, %v1071
        %v1074 = vmul.f32 %v1068, %v906
        %v1075 = vadd.f32 %v1073, %v1074
        %1076 = vset.pattern.permute.xlu0 1
        %1077 = vperm.xlu0 %1076, %v448
        %v1078 = vpop.permute.xlu0 %1077
        %v1080 = vmul.f32 %v1078, %v1075
        %v1081 = vadd.f32 %v913, %v1080
        %1082 = vmatprep.subr.mxu0 %v445
        %1083 = vmatpush1.msra.mxu0 %v444
        %1084 = vmatprep.subr.mxu0 %v442
        %1085 = vmatpush1.msra.mxu0 %v441
        %1086 = vmatprep.subr.mxu0 %v439
        %1087 = vmatpush1.msra.mxu0 %v438
        %1088 = vmatprep.subr.mxu0 %v436
        %1089 = vmatpush1.msra.mxu0 %v435
        %1090 = vmatprep.subr.mxu0 %v433
        %1091 = vmatpush1.msra.mxu0 %v432
        %1092 = vmatprep.subr.mxu0 %v430
        %1093 = vmatpush1.msra.mxu0 %v429
        %1094 = vmatprep.subr.mxu0 %v427
        %1095 = vmatpush1.msra.mxu0 %v426
        %1096 = vmatprep.subr.mxu0 %v424
        %1097 = vmatpush1.msra.mxu0 %v423
        %1098 = vmatprep.subr.mxu0 %v421
        %1099 = vmatpush1.msra.mxu0 %v420
        %1100 = vmatprep.subr.mxu0 %v418
        %1101 = vmatpush1.msra.mxu0 %v417
        %1102 = vmatprep.subr.mxu0 %v415
        %1103 = vmatpush1.msra.mxu0 %v414
        %1104 = vmatprep.subr.mxu0 %v412
        %1105 = vmatpush1.msra.mxu0 %v411
        %1106 = vmatprep.subr.mxu0 %v409
        %1107 = vmatpush1.msra.mxu0 %v408
        %1108 = vmatprep.subr.mxu0 %v406
        %1109 = vmatpush1.msra.mxu0 %v405
        %1110 = vmatprep.subr.mxu0 %v403
        %1111 = vmatpush1.msra.mxu0 %v402
        %1112 = vmatprep.subr.mxu0 %v400
        %1113 = vmatpush1.msra.mxu0 %v399
        %1114 = vmatprep.subr.mxu0 0.0
        %1115 = vmatpush2.msra.mxu0 0.0
        %1116 = vmatprep.subr.mxu0 0.0
        %1117 = vmatpush2.msra.mxu0 0.0
        %1118 = vmatprep.subr.mxu0 0.0
        %1119 = vmatpush2.msra.mxu0 0.0
        %1120 = vmatprep.subr.mxu0 0.0
        %1121 = vmatpush2.msra.mxu0 0.0
        %1122 = vmatprep.subr.mxu0 0.0
        %1123 = vmatpush2.msra.mxu0 0.0
        %1124 = vmatprep.subr.mxu0 0.0
        %1125 = vmatpush2.msra.mxu0 0.0
        %1126 = vmatprep.subr.mxu0 0.0
        %1127 = vmatpush2.msra.mxu0 0.0
        %1128 = vmatprep.subr.mxu0 0.0
        %1129 = vmatpush2.msra.mxu0 0.0
        %1130 = vmatprep.subr.mxu0 0.0
        %1131 = vmatpush2.msra.mxu0 0.0
        %1132 = vmatprep.subr.mxu0 0.0
        %1133 = vmatpush2.msra.mxu0 0.0
        %1134 = vmatprep.subr.mxu0 0.0
        %1135 = vmatpush2.msra.mxu0 0.0
        %1136 = vmatprep.subr.mxu0 0.0
        %1137 = vmatpush2.msra.mxu0 0.0
        %1138 = vmatprep.subr.mxu0 0.0
        %1139 = vmatpush2.msra.mxu0 0.0
        %1140 = vmatprep.subr.mxu0 0.0
        %1141 = vmatpush2.msra.mxu0 0.0
        %1142 = vmatprep.subr.mxu0 0.0
        %1143 = vmatpush2.msra.mxu0 0.0
        %1144 = vmatprep.subr.mxu0 0.0
        %1145 = vmatpush2.msra.mxu0 0.0
        %1146 = vmatprep.mubr.f32.mxu0 0.0
        %1147 = vmatmul.mubr.f32.gmra.mxu0 %v1075
        %v1148 = vpop.f32.mrf.mxu0
        %v1149 = vadd.f32 %v733, %v1148
        %v1150 = vpop.f32.mrf.mxu0
        %v1151 = vadd.f32 %v737, %v1150
        %1152 = vdwg.mxu0
        %1153 = vmatprep.subr.mxu0 0.0
        %1154 = vmatpush1.msra.mxu0 %v446
        %1155 = vmatprep.subr.mxu0 0.0
        %1156 = vmatpush1.msra.mxu0 %v443
        %1157 = vmatprep.subr.mxu0 0.0
        %1158 = vmatpush1.msra.mxu0 %v440
        %1159 = vmatprep.subr.mxu0 0.0
        %1160 = vmatpush1.msra.mxu0 %v437
        %1161 = vmatprep.subr.mxu0 0.0
        %1162 = vmatpush1.msra.mxu0 %v434
        %1163 = vmatprep.subr.mxu0 0.0
        %1164 = vmatpush1.msra.mxu0 %v431
        %1165 = vmatprep.subr.mxu0 0.0
        %1166 = vmatpush1.msra.mxu0 %v428
        %1167 = vmatprep.subr.mxu0 0.0
        %1168 = vmatpush1.msra.mxu0 %v425
        %1169 = vmatprep.subr.mxu0 0.0
        %1170 = vmatpush1.msra.mxu0 %v422
        %1171 = vmatprep.subr.mxu0 0.0
        %1172 = vmatpush1.msra.mxu0 %v419
        %1173 = vmatprep.subr.mxu0 0.0
        %1174 = vmatpush1.msra.mxu0 %v416
        %1175 = vmatprep.subr.mxu0 0.0
        %1176 = vmatpush1.msra.mxu0 %v413
        %1177 = vmatprep.subr.mxu0 0.0
        %1178 = vmatpush1.msra.mxu0 %v410
        %1179 = vmatprep.subr.mxu0 0.0
        %1180 = vmatpush1.msra.mxu0 %v407
        %1181 = vmatprep.subr.mxu0 0.0
        %1182 = vmatpush1.msra.mxu0 %v404
        %1183 = vmatprep.subr.mxu0 0.0
        %1184 = vmatpush1.msra.mxu0 %v401
        %1185 = vmatprep.subr.mxu0 0.0
        %1186 = vmatpush2.msra.mxu0 0.0
        %1187 = vmatprep.subr.mxu0 0.0
        %1188 = vmatpush2.msra.mxu0 0.0
        %1189 = vmatprep.subr.mxu0 0.0
        %1190 = vmatpush2.msra.mxu0 0.0
        %1191 = vmatprep.subr.mxu0 0.0
        %1192 = vmatpush2.msra.mxu0 0.0
        %1193 = vmatprep.subr.mxu0 0.0
        %1194 = vmatpush2.msra.mxu0 0.0
        %1195 = vmatprep.subr.mxu0 0.0
        %1196 = vmatpush2.msra.mxu0 0.0
        %1197 = vmatprep.subr.mxu0 0.0
        %1198 = vmatpush2.msra.mxu0 0.0
        %1199 = vmatprep.subr.mxu0 0.0
        %1200 = vmatpush2.msra.mxu0 0.0
        %1201 = vmatprep.subr.mxu0 0.0
        %1202 = vmatpush2.msra.mxu0 0.0
        %1203 = vmatprep.subr.mxu0 0.0
        %1204 = vmatpush2.msra.mxu0 0.0
        %1205 = vmatprep.subr.mxu0 0.0
        %1206 = vmatpush2.msra.mxu0 0.0
        %1207 = vmatprep.subr.mxu0 0.0
        %1208 = vmatpush2.msra.mxu0 0.0
        %1209 = vmatprep.subr.mxu0 0.0
        %1210 = vmatpush2.msra.mxu0 0.0
        %1211 = vmatprep.subr.mxu0 0.0
        %1212 = vmatpush2.msra.mxu0 0.0
        %1213 = vmatprep.subr.mxu0 0.0
        %1214 = vmatpush2.msra.mxu0 0.0
        %1215 = vmatprep.subr.mxu0 0.0
        %1216 = vmatpush2.msra.mxu0 0.0
        %1217 = vmatprep.mubr.f32.mxu0 0.0
        %1218 = vmatmul.mubr.f32.gmra.mxu0 %v1075
        %v1219 = vpop.f32.mrf.mxu0
        %v1220 = vadd.f32 %v741, %v1219
        %v1221 = vpop.f32.mrf.mxu0
        %1222 = vdwg.mxu0
        %v1223 = vadd.f32 %v590, %v1149
        %v1224 = vxor.u32 %v1223, 2147483648
        %v1225 = vmul.f32 %v1224, 1.442695
        %v1226 = vpow.pop %v1225
        %v1227 = vadd.f32 %v1226, 1.0
        %v1228 = vrcp.pop %v1227
        %v1229 = vmul.f32 1.0, %v1228
        %v1230 = vadd.f32 %v592, %v1151
        %v1231 = vxor.u32 %v1230, 2147483648
        %v1232 = vmul.f32 %v1231, 1.442695
        %v1233 = vpow.pop %v1232
        %v1234 = vadd.f32 %v1233, 1.0
        %v1235 = vrcp.pop %v1234
        %v1236 = vmul.f32 1.0, %v1235
        %v1237 = vmul.f32 %v1229, %v1220
        %v1238 = vadd.f32 %v701, %v1237
        %v1239 = vtanh.pop %v1238
        %v1240 = vsub.f32 1.0, %v1236
        %v1241 = vmul.f32 %v1240, %v1239
        %v1242 = vmul.f32 %v1236, %v1075
        %v1243 = vadd.f32 %v1241, %v1242
        %1244 = vset.pattern.permute.xlu0 2
        %1245 = vperm.xlu0 %1244, %v448
        %v1246 = vpop.permute.xlu0 %1245
        %v1248 = vmul.f32 %v1246, %v1243
        %v1249 = vadd.f32 %v1081, %v1248
        %1250 = vmatprep.subr.mxu0 %v445
        %1251 = vmatpush1.msra.mxu0 %v444
        %1252 = vmatprep.subr.mxu0 %v442
        %1253 = vmatpush1.msra.mxu0 %v441
        %1254 = vmatprep.subr.mxu0 %v439
        %1255 = vmatpush1.msra.mxu0 %v438
        %1256 = vmatprep.subr.mxu0 %v436
        %1257 = vmatpush1.msra.mxu0 %v435
        %1258 = vmatprep.subr.mxu0 %v433
        %1259 = vmatpush1.msra.mxu0 %v432
        %1260 = vmatprep.subr.mxu0 %v430
        %1261 = vmatpush1.msra.mxu0 %v429
        %1262 = vmatprep.subr.mxu0 %v427
        %1263 = vmatpush1.msra.mxu0 %v426
        %1264 = vmatprep.subr.mxu0 %v424
        %1265 = vmatpush1.msra.mxu0 %v423
        %1266 = vmatprep.subr.mxu0 %v421
        %1267 = vmatpush1.msra.mxu0 %v420
        %1268 = vmatprep.subr.mxu0 %v418
        %1269 = vmatpush1.msra.mxu0 %v417
        %1270 = vmatprep.subr.mxu0 %v415
        %1271 = vmatpush1.msra.mxu0 %v414
        %1272 = vmatprep.subr.mxu0 %v412
        %1273 = vmatpush1.msra.mxu0 %v411
        %1274 = vmatprep.subr.mxu0 %v409
        %1275 = vmatpush1.msra.mxu0 %v408
        %1276 = vmatprep.subr.mxu0 %v406
        %1277 = vmatpush1.msra.mxu0 %v405
        %1278 = vmatprep.subr.mxu0 %v403
        %1279 = vmatpush1.msra.mxu0 %v402
        %1280 = vmatprep.subr.mxu0 %v400
        %1281 = vmatpush1.msra.mxu0 %v399
        %1282 = vmatprep.subr.mxu0 0.0
        %1283 = vmatpush2.msra.mxu0 0.0
        %1284 = vmatprep.subr.mxu0 0.0
        %1285 = vmatpush2.msra.mxu0 0.0
        %1286 = vmatprep.subr.mxu0 0.0
        %1287 = vmatpush2.msra.mxu0 0.0
        %1288 = vmatprep.subr.mxu0 0.0
        %1289 = vmatpush2.msra.mxu0 0.0
        %1290 = vmatprep.subr.mxu0 0.0
        %1291 = vmatpush2.msra.mxu0 0.0
        %1292 = vmatprep.subr.mxu0 0.0
        %1293 = vmatpush2.msra.mxu0 0.0
        %1294 = vmatprep.subr.mxu0 0.0
        %1295 = vmatpush2.msra.mxu0 0.0
        %1296 = vmatprep.subr.mxu0 0.0
        %1297 = vmatpush2.msra.mxu0 0.0
        %1298 = vmatprep.subr.mxu0 0.0
        %1299 = vmatpush2.msra.mxu0 0.0
        %1300 = vmatprep.subr.mxu0 0.0
        %1301 = vmatpush2.msra.mxu0 0.0
        %1302 = vmatprep.subr.mxu0 0.0
        %1303 = vmatpush2.msra.mxu0 0.0
        %1304 = vmatprep.subr.mxu0 0.0
        %1305 = vmatpush2.msra.mxu0 0.0
        %1306 = vmatprep.subr.mxu0 0.0
        %1307 = vmatpush2.msra.mxu0 0.0
        %1308 = vmatprep.subr.mxu0 0.0
        %1309 = vmatpush2.msra.mxu0 0.0
        %1310 = vmatprep.subr.mxu0 0.0
        %1311 = vmatpush2.msra.mxu0 0.0
        %1312 = vmatprep.subr.mxu0 0.0
        %1313 = vmatpush2.msra.mxu0 0.0
        %1314 = vmatprep.mubr.f32.mxu0 0.0
        %1315 = vmatmul.mubr.f32.gmra.mxu0 %v1243
        %v1316 = vpop.f32.mrf.mxu0
        %v1317 = vadd.f32 %v733, %v1316
        %v1318 = vpop.f32.mrf.mxu0
        %v1319 = vadd.f32 %v737, %v1318
        %1320 = vdwg.mxu0
        %1321 = vmatprep.subr.mxu0 0.0
        %1322 = vmatpush1.msra.mxu0 %v446
        %1323 = vmatprep.subr.mxu0 0.0
        %1324 = vmatpush1.msra.mxu0 %v443
        %1325 = vmatprep.subr.mxu0 0.0
        %1326 = vmatpush1.msra.mxu0 %v440
        %1327 = vmatprep.subr.mxu0 0.0
        %1328 = vmatpush1.msra.mxu0 %v437
        %1329 = vmatprep.subr.mxu0 0.0
        %1330 = vmatpush1.msra.mxu0 %v434
        %1331 = vmatprep.subr.mxu0 0.0
        %1332 = vmatpush1.msra.mxu0 %v431
        %1333 = vmatprep.subr.mxu0 0.0
        %1334 = vmatpush1.msra.mxu0 %v428
        %1335 = vmatprep.subr.mxu0 0.0
        %1336 = vmatpush1.msra.mxu0 %v425
        %1337 = vmatprep.subr.mxu0 0.0
        %1338 = vmatpush1.msra.mxu0 %v422
        %1339 = vmatprep.subr.mxu0 0.0
        %1340 = vmatpush1.msra.mxu0 %v419
        %1341 = vmatprep.subr.mxu0 0.0
        %1342 = vmatpush1.msra.mxu0 %v416
        %1343 = vmatprep.subr.mxu0 0.0
        %1344 = vmatpush1.msra.mxu0 %v413
        %1345 = vmatprep.subr.mxu0 0.0
        %1346 = vmatpush1.msra.mxu0 %v410
        %1347 = vmatprep.subr.mxu0 0.0
        %1348 = vmatpush1.msra.mxu0 %v407
        %1349 = vmatprep.subr.mxu0 0.0
        %1350 = vmatpush1.msra.mxu0 %v404
        %1351 = vmatprep.subr.mxu0 0.0
        %1352 = vmatpush1.msra.mxu0 %v401
        %1353 = vmatprep.subr.mxu0 0.0
        %1354 = vmatpush2.msra.mxu0 0.0
        %1355 = vmatprep.subr.mxu0 0.0
        %1356 = vmatpush2.msra.mxu0 0.0
        %1357 = vmatprep.subr.mxu0 0.0
        %1358 = vmatpush2.msra.mxu0 0.0
        %1359 = vmatprep.subr.mxu0 0.0
        %1360 = vmatpush2.msra.mxu0 0.0
        %1361 = vmatprep.subr.mxu0 0.0
        %1362 = vmatpush2.msra.mxu0 0.0
        %1363 = vmatprep.subr.mxu0 0.0
        %1364 = vmatpush2.msra.mxu0 0.0
        %1365 = vmatprep.subr.mxu0 0.0
        %1366 = vmatpush2.msra.mxu0 0.0
        %1367 = vmatprep.subr.mxu0 0.0
        %1368 = vmatpush2.msra.mxu0 0.0
        %1369 = vmatprep.subr.mxu0 0.0
        %1370 = vmatpush2.msra.mxu0 0.0
        %1371 = vmatprep.subr.mxu0 0.0
        %1372 = vmatpush2.msra.mxu0 0.0
        %1373 = vmatprep.subr.mxu0 0.0
        %1374 = vmatpush2.msra.mxu0 0.0
        %1375 = vmatprep.subr.mxu0 0.0
        %1376 = vmatpush2.msra.mxu0 0.0
        %1377 = vmatprep.subr.mxu0 0.0
        %1378 = vmatpush2.msra.mxu0 0.0
        %1379 = vmatprep.subr.mxu0 0.0
        %1380 = vmatpush2.msra.mxu0 0.0
        %1381 = vmatprep.subr.mxu0 0.0
        %1382 = vmatpush2.msra.mxu0 0.0
        %1383 = vmatprep.subr.mxu0 0.0
        %1384 = vmatpush2.msra.mxu0 0.0
        %1385 = vmatprep.mubr.f32.mxu0 0.0
        %1386 = vmatmul.mubr.f32.gmra.mxu0 %v1243
        %v1387 = vpop.f32.mrf.mxu0
        %v1388 = vadd.f32 %v741, %v1387
        %v1389 = vpop.f32.mrf.mxu0
        %1390 = vdwg.mxu0
        %v1391 = vadd.f32 %v596, %v1317
        %v1392 = vxor.u32 %v1391, 2147483648
        %v1393 = vmul.f32 %v1392, 1.442695
        %v1394 = vpow.pop %v1393
        %v1395 = vadd.f32 %v1394, 1.0
        %v1396 = vrcp.pop %v1395
        %v1397 = vmul.f32 1.0, %v1396
        %v1398 = vadd.f32 %v598, %v1319
        %v1399 = vxor.u32 %v1398, 2147483648
        %v1400 = vmul.f32 %v1399, 1.442695
        %v1401 = vpow.pop %v1400
        %v1402 = vadd.f32 %v1401, 1.0
        %v1403 = vrcp.pop %v1402
        %v1404 = vmul.f32 1.0, %v1403
        %v1405 = vmul.f32 %v1397, %v1388
        %v1406 = vadd.f32 %v706, %v1405
        %v1407 = vtanh.pop %v1406
        %v1408 = vsub.f32 1.0, %v1404
        %v1409 = vmul.f32 %v1408, %v1407
        %v1410 = vmul.f32 %v1404, %v1243
        %v1411 = vadd.f32 %v1409, %v1410
        %1412 = vset.pattern.permute.xlu0 3
        %1413 = vperm.xlu0 %1412, %v448
        %v1414 = vpop.permute.xlu0 %1413
        %v1416 = vmul.f32 %v1414, %v1411
        %v1417 = vadd.f32 %v1249, %v1416
        %1418 = vmatprep.subr.mxu0 %v445
        %1419 = vmatpush1.msra.mxu0 %v444
        %1420 = vmatprep.subr.mxu0 %v442
        %1421 = vmatpush1.msra.mxu0 %v441
        %1422 = vmatprep.subr.mxu0 %v439
        %1423 = vmatpush1.msra.mxu0 %v438
        %1424 = vmatprep.subr.mxu0 %v436
        %1425 = vmatpush1.msra.mxu0 %v435
        %1426 = vmatprep.subr.mxu0 %v433
        %1427 = vmatpush1.msra.mxu0 %v432
        %1428 = vmatprep.subr.mxu0 %v430
        %1429 = vmatpush1.msra.mxu0 %v429
        %1430 = vmatprep.subr.mxu0 %v427
        %1431 = vmatpush1.msra.mxu0 %v426
        %1432 = vmatprep.subr.mxu0 %v424
        %1433 = vmatpush1.msra.mxu0 %v423
        %1434 = vmatprep.subr.mxu0 %v421
        %1435 = vmatpush1.msra.mxu0 %v420
        %1436 = vmatprep.subr.mxu0 %v418
        %1437 = vmatpush1.msra.mxu0 %v417
        %1438 = vmatprep.subr.mxu0 %v415
        %1439 = vmatpush1.msra.mxu0 %v414
        %1440 = vmatprep.subr.mxu0 %v412
        %1441 = vmatpush1.msra.mxu0 %v411
        %1442 = vmatprep.subr.mxu0 %v409
        %1443 = vmatpush1.msra.mxu0 %v408
        %1444 = vmatprep.subr.mxu0 %v406
        %1445 = vmatpush1.msra.mxu0 %v405
        %1446 = vmatprep.subr.mxu0 %v403
        %1447 = vmatpush1.msra.mxu0 %v402
        %1448 = vmatprep.subr.mxu0 %v400
        %1449 = vmatpush1.msra.mxu0 %v399
        %1450 = vmatprep.subr.mxu0 0.0
        %1451 = vmatpush2.msra.mxu0 0.0
        %1452 = vmatprep.subr.mxu0 0.0
        %1453 = vmatpush2.msra.mxu0 0.0
        %1454 = vmatprep.subr.mxu0 0.0
        %1455 = vmatpush2.msra.mxu0 0.0
        %1456 = vmatprep.subr.mxu0 0.0
        %1457 = vmatpush2.msra.mxu0 0.0
        %1458 = vmatprep.subr.mxu0 0.0
        %1459 = vmatpush2.msra.mxu0 0.0
        %1460 = vmatprep.subr.mxu0 0.0
        %1461 = vmatpush2.msra.mxu0 0.0
        %1462 = vmatprep.subr.mxu0 0.0
        %1463 = vmatpush2.msra.mxu0 0.0
        %1464 = vmatprep.subr.mxu0 0.0
        %1465 = vmatpush2.msra.mxu0 0.0
        %1466 = vmatprep.subr.mxu0 0.0
        %1467 = vmatpush2.msra.mxu0 0.0
        %1468 = vmatprep.subr.mxu0 0.0
        %1469 = vmatpush2.msra.mxu0 0.0
        %1470 = vmatprep.subr.mxu0 0.0
        %1471 = vmatpush2.msra.mxu0 0.0
        %1472 = vmatprep.subr.mxu0 0.0
        %1473 = vmatpush2.msra.mxu0 0.0
        %1474 = vmatprep.subr.mxu0 0.0
        %1475 = vmatpush2.msra.mxu0 0.0
        %1476 = vmatprep.subr.mxu0 0.0
        %1477 = vmatpush2.msra.mxu0 0.0
        %1478 = vmatprep.subr.mxu0 0.0
        %1479 = vmatpush2.msra.mxu0 0.0
        %1480 = vmatprep.subr.mxu0 0.0
        %1481 = vmatpush2.msra.mxu0 0.0
        %1482 = vmatprep.mubr.f32.mxu0 0.0
        %1483 = vmatmul.mubr.f32.gmra.mxu0 %v1411
        %v1484 = vpop.f32.mrf.mxu0
        %v1485 = vadd.f32 %v733, %v1484
        %v1486 = vpop.f32.mrf.mxu0
        %v1487 = vadd.f32 %v737, %v1486
        %1488 = vdwg.mxu0
        %1489 = vmatprep.subr.mxu0 0.0
        %1490 = vmatpush1.msra.mxu0 %v446
        %1491 = vmatprep.subr.mxu0 0.0
        %1492 = vmatpush1.msra.mxu0 %v443
        %1493 = vmatprep.subr.mxu0 0.0
        %1494 = vmatpush1.msra.mxu0 %v440
        %1495 = vmatprep.subr.mxu0 0.0
        %1496 = vmatpush1.msra.mxu0 %v437
        %1497 = vmatprep.subr.mxu0 0.0
        %1498 = vmatpush1.msra.mxu0 %v434
        %1499 = vmatprep.subr.mxu0 0.0
        %1500 = vmatpush1.msra.mxu0 %v431
        %1501 = vmatprep.subr.mxu0 0.0
        %1502 = vmatpush1.msra.mxu0 %v428
        %1503 = vmatprep.subr.mxu0 0.0
        %1504 = vmatpush1.msra.mxu0 %v425
        %1505 = vmatprep.subr.mxu0 0.0
        %1506 = vmatpush1.msra.mxu0 %v422
        %1507 = vmatprep.subr.mxu0 0.0
        %1508 = vmatpush1.msra.mxu0 %v419
        %1509 = vmatprep.subr.mxu0 0.0
        %1510 = vmatpush1.msra.mxu0 %v416
        %1511 = vmatprep.subr.mxu0 0.0
        %1512 = vmatpush1.msra.mxu0 %v413
        %1513 = vmatprep.subr.mxu0 0.0
        %1514 = vmatpush1.msra.mxu0 %v410
        %1515 = vmatprep.subr.mxu0 0.0
        %1516 = vmatpush1.msra.mxu0 %v407
        %1517 = vmatprep.subr.mxu0 0.0
        %1518 = vmatpush1.msra.mxu0 %v404
        %1519 = vmatprep.subr.mxu0 0.0
        %1520 = vmatpush1.msra.mxu0 %v401
        %1521 = vmatprep.subr.mxu0 0.0
        %1522 = vmatpush2.msra.mxu0 0.0
        %1523 = vmatprep.subr.mxu0 0.0
        %1524 = vmatpush2.msra.mxu0 0.0
        %1525 = vmatprep.subr.mxu0 0.0
        %1526 = vmatpush2.msra.mxu0 0.0
        %1527 = vmatprep.subr.mxu0 0.0
        %1528 = vmatpush2.msra.mxu0 0.0
        %1529 = vmatprep.subr.mxu0 0.0
        %1530 = vmatpush2.msra.mxu0 0.0
        %1531 = vmatprep.subr.mxu0 0.0
        %1532 = vmatpush2.msra.mxu0 0.0
        %1533 = vmatprep.subr.mxu0 0.0
        %1534 = vmatpush2.msra.mxu0 0.0
        %1535 = vmatprep.subr.mxu0 0.0
        %1536 = vmatpush2.msra.mxu0 0.0
        %1537 = vmatprep.subr.mxu0 0.0
        %1538 = vmatpush2.msra.mxu0 0.0
        %1539 = vmatprep.subr.mxu0 0.0
        %1540 = vmatpush2.msra.mxu0 0.0
        %1541 = vmatprep.subr.mxu0 0.0
        %1542 = vmatpush2.msra.mxu0 0.0
        %1543 = vmatprep.subr.mxu0 0.0
        %1544 = vmatpush2.msra.mxu0 0.0
        %1545 = vmatprep.subr.mxu0 0.0
        %1546 = vmatpush2.msra.mxu0 0.0
        %1547 = vmatprep.subr.mxu0 0.0
        %1548 = vmatpush2.msra.mxu0 0.0
        %1549 = vmatprep.subr.mxu0 0.0
        %1550 = vmatpush2.msra.mxu0 0.0
        %1551 = vmatprep.subr.mxu0 0.0
        %1552 = vmatpush2.msra.mxu0 0.0
        %1553 = vmatprep.mubr.f32.mxu0 0.0
        %1554 = vmatmul.mubr.f32.gmra.mxu0 %v1411
        %v1555 = vpop.f32.mrf.mxu0
        %v1556 = vadd.f32 %v741, %v1555
        %v1557 = vpop.f32.mrf.mxu0
        %1558 = vdwg.mxu0
        %v1559 = vadd.f32 %v602, %v1485
        %v1560 = vxor.u32 %v1559, 2147483648
        %v1561 = vmul.f32 %v1560, 1.442695
        %v1562 = vpow.pop %v1561
        %v1563 = vadd.f32 %v1562, 1.0
        %v1564 = vrcp.pop %v1563
        %v1565 = vmul.f32 1.0, %v1564
        %v1566 = vadd.f32 %v604, %v1487
        %v1567 = vxor.u32 %v1566, 2147483648
        %v1568 = vmul.f32 %v1567, 1.442695
        %v1569 = vpow.pop %v1568
        %v1570 = vadd.f32 %v1569, 1.0
        %v1571 = vrcp.pop %v1570
        %v1572 = vmul.f32 1.0, %v1571
        %v1573 = vmul.f32 %v1565, %v1556
        %v1574 = vadd.f32 %v711, %v1573
        %v1575 = vtanh.pop %v1574
        %v1576 = vsub.f32 1.0, %v1572
        %v1577 = vmul.f32 %v1576, %v1575
        %v1578 = vmul.f32 %v1572, %v1411
        %v1579 = vadd.f32 %v1577, %v1578
        %1580 = vset.pattern.permute.xlu0 4
        %1581 = vperm.xlu0 %1580, %v448
        %v1582 = vpop.permute.xlu0 %1581
        %v1584 = vmul.f32 %v1582, %v1579
        %v1585 = vadd.f32 %v1417, %v1584
        %1586 = vmatprep.subr.mxu0 %v445
        %1587 = vmatpush1.msra.mxu0 %v444
        %1588 = vmatprep.subr.mxu0 %v442
        %1589 = vmatpush1.msra.mxu0 %v441
        %1590 = vmatprep.subr.mxu0 %v439
        %1591 = vmatpush1.msra.mxu0 %v438
        %1592 = vmatprep.subr.mxu0 %v436
        %1593 = vmatpush1.msra.mxu0 %v435
        %1594 = vmatprep.subr.mxu0 %v433
        %1595 = vmatpush1.msra.mxu0 %v432
        %1596 = vmatprep.subr.mxu0 %v430
        %1597 = vmatpush1.msra.mxu0 %v429
        %1598 = vmatprep.subr.mxu0 %v427
        %1599 = vmatpush1.msra.mxu0 %v426
        %1600 = vmatprep.subr.mxu0 %v424
        %1601 = vmatpush1.msra.mxu0 %v423
        %1602 = vmatprep.subr.mxu0 %v421
        %1603 = vmatpush1.msra.mxu0 %v420
        %1604 = vmatprep.subr.mxu0 %v418
        %1605 = vmatpush1.msra.mxu0 %v417
        %1606 = vmatprep.subr.mxu0 %v415
        %1607 = vmatpush1.msra.mxu0 %v414
        %1608 = vmatprep.subr.mxu0 %v412
        %1609 = vmatpush1.msra.mxu0 %v411
        %1610 = vmatprep.subr.mxu0 %v409
        %1611 = vmatpush1.msra.mxu0 %v408
        %1612 = vmatprep.subr.mxu0 %v406
        %1613 = vmatpush1.msra.mxu0 %v405
        %1614 = vmatprep.subr.mxu0 %v403
        %1615 = vmatpush1.msra.mxu0 %v402
        %1616 = vmatprep.subr.mxu0 %v400
        %1617 = vmatpush1.msra.mxu0 %v399
        %1618 = vmatprep.subr.mxu0 0.0
        %1619 = vmatpush2.msra.mxu0 0.0
        %1620 = vmatprep.subr.mxu0 0.0
        %1621 = vmatpush2.msra.mxu0 0.0
        %1622 = vmatprep.subr.mxu0 0.0
        %1623 = vmatpush2.msra.mxu0 0.0
        %1624 = vmatprep.subr.mxu0 0.0
        %1625 = vmatpush2.msra.mxu0 0.0
        %1626 = vmatprep.subr.mxu0 0.0
        %1627 = vmatpush2.msra.mxu0 0.0
        %1628 = vmatprep.subr.mxu0 0.0
        %1629 = vmatpush2.msra.mxu0 0.0
        %1630 = vmatprep.subr.mxu0 0.0
        %1631 = vmatpush2.msra.mxu0 0.0
        %1632 = vmatprep.subr.mxu0 0.0
        %1633 = vmatpush2.msra.mxu0 0.0
        %1634 = vmatprep.subr.mxu0 0.0
        %1635 = vmatpush2.msra.mxu0 0.0
        %1636 = vmatprep.subr.mxu0 0.0
        %1637 = vmatpush2.msra.mxu0 0.0
        %1638 = vmatprep.subr.mxu0 0.0
        %1639 = vmatpush2.msra.mxu0 0.0
        %1640 = vmatprep.subr.mxu0 0.0
        %1641 = vmatpush2.msra.mxu0 0.0
        %1642 = vmatprep.subr.mxu0 0.0
        %1643 = vmatpush2.msra.mxu0 0.0
        %1644 = vmatprep.subr.mxu0 0.0
        %1645 = vmatpush2.msra.mxu0 0.0
        %1646 = vmatprep.subr.mxu0 0.0
        %1647 = vmatpush2.msra.mxu0 0.0
        %1648 = vmatprep.subr.mxu0 0.0
        %1649 = vmatpush2.msra.mxu0 0.0
        %1650 = vmatprep.mubr.f32.mxu0 0.0
        %1651 = vmatmul.mubr.f32.gmra.mxu0 %v1579
        %v1652 = vpop.f32.mrf.mxu0
        %v1653 = vadd.f32 %v733, %v1652
        %v1654 = vpop.f32.mrf.mxu0
        %v1655 = vadd.f32 %v737, %v1654
        %1656 = vdwg.mxu0
        %1657 = vmatprep.subr.mxu0 0.0
        %1658 = vmatpush1.msra.mxu0 %v446
        %1659 = vmatprep.subr.mxu0 0.0
        %1660 = vmatpush1.msra.mxu0 %v443
        %1661 = vmatprep.subr.mxu0 0.0
        %1662 = vmatpush1.msra.mxu0 %v440
        %1663 = vmatprep.subr.mxu0 0.0
        %1664 = vmatpush1.msra.mxu0 %v437
        %1665 = vmatprep.subr.mxu0 0.0
        %1666 = vmatpush1.msra.mxu0 %v434
        %1667 = vmatprep.subr.mxu0 0.0
        %1668 = vmatpush1.msra.mxu0 %v431
        %1669 = vmatprep.subr.mxu0 0.0
        %1670 = vmatpush1.msra.mxu0 %v428
        %1671 = vmatprep.subr.mxu0 0.0
        %1672 = vmatpush1.msra.mxu0 %v425
        %1673 = vmatprep.subr.mxu0 0.0
        %1674 = vmatpush1.msra.mxu0 %v422
        %1675 = vmatprep.subr.mxu0 0.0
        %1676 = vmatpush1.msra.mxu0 %v419
        %1677 = vmatprep.subr.mxu0 0.0
        %1678 = vmatpush1.msra.mxu0 %v416
        %1679 = vmatprep.subr.mxu0 0.0
        %1680 = vmatpush1.msra.mxu0 %v413
        %1681 = vmatprep.subr.mxu0 0.0
        %1682 = vmatpush1.msra.mxu0 %v410
        %1683 = vmatprep.subr.mxu0 0.0
        %1684 = vmatpush1.msra.mxu0 %v407
        %1685 = vmatprep.subr.mxu0 0.0
        %1686 = vmatpush1.msra.mxu0 %v404
        %1687 = vmatprep.subr.mxu0 0.0
        %1688 = vmatpush1.msra.mxu0 %v401
        %1689 = vmatprep.subr.mxu0 0.0
        %1690 = vmatpush2.msra.mxu0 0.0
        %1691 = vmatprep.subr.mxu0 0.0
        %1692 = vmatpush2.msra.mxu0 0.0
        %1693 = vmatprep.subr.mxu0 0.0
        %1694 = vmatpush2.msra.mxu0 0.0
        %1695 = vmatprep.subr.mxu0 0.0
        %1696 = vmatpush2.msra.mxu0 0.0
        %1697 = vmatprep.subr.mxu0 0.0
        %1698 = vmatpush2.msra.mxu0 0.0
        %1699 = vmatprep.subr.mxu0 0.0
        %1700 = vmatpush2.msra.mxu0 0.0
        %1701 = vmatprep.subr.mxu0 0.0
        %1702 = vmatpush2.msra.mxu0 0.0
        %1703 = vmatprep.subr.mxu0 0.0
        %1704 = vmatpush2.msra.mxu0 0.0
        %1705 = vmatprep.subr.mxu0 0.0
        %1706 = vmatpush2.msra.mxu0 0.0
        %1707 = vmatprep.subr.mxu0 0.0
        %1708 = vmatpush2.msra.mxu0 0.0
        %1709 = vmatprep.subr.mxu0 0.0
        %1710 = vmatpush2.msra.mxu0 0.0
        %1711 = vmatprep.subr.mxu0 0.0
        %1712 = vmatpush2.msra.mxu0 0.0
        %1713 = vmatprep.subr.mxu0 0.0
        %1714 = vmatpush2.msra.mxu0 0.0
        %1715 = vmatprep.subr.mxu0 0.0
        %1716 = vmatpush2.msra.mxu0 0.0
        %1717 = vmatprep.subr.mxu0 0.0
        %1718 = vmatpush2.msra.mxu0 0.0
        %1719 = vmatprep.subr.mxu0 0.0
        %1720 = vmatpush2.msra.mxu0 0.0
        %1721 = vmatprep.mubr.f32.mxu0 0.0
        %1722 = vmatmul.mubr.f32.gmra.mxu0 %v1579
        %v1723 = vpop.f32.mrf.mxu0
        %v1724 = vadd.f32 %v741, %v1723
        %v1725 = vpop.f32.mrf.mxu0
        %1726 = vdwg.mxu0
        %v1727 = vadd.f32 %v608, %v1653
        %v1728 = vxor.u32 %v1727, 2147483648
        %v1729 = vmul.f32 %v1728, 1.442695
        %v1730 = vpow.pop %v1729
        %v1731 = vadd.f32 %v1730, 1.0
        %v1732 = vrcp.pop %v1731
        %v1733 = vmul.f32 1.0, %v1732
        %v1734 = vadd.f32 %v610, %v1655
        %v1735 = vxor.u32 %v1734, 2147483648
        %v1736 = vmul.f32 %v1735, 1.442695
        %v1737 = vpow.pop %v1736
        %v1738 = vadd.f32 %v1737, 1.0
        %v1739 = vrcp.pop %v1738
        %v1740 = vmul.f32 1.0, %v1739
        %v1741 = vmul.f32 %v1733, %v1724
        %v1742 = vadd.f32 %v716, %v1741
        %v1743 = vtanh.pop %v1742
        %v1744 = vsub.f32 1.0, %v1740
        %v1745 = vmul.f32 %v1744, %v1743
        %v1746 = vmul.f32 %v1740, %v1579
        %v1747 = vadd.f32 %v1745, %v1746
        %1748 = vset.pattern.permute.xlu0 5
        %1749 = vperm.xlu0 %1748, %v448
        %v1750 = vpop.permute.xlu0 %1749
        %v1752 = vmul.f32 %v1750, %v1747
        %v1753 = vadd.f32 %v1585, %v1752
        %1754 = vmatprep.subr.mxu0 %v445
        %1755 = vmatpush1.msra.mxu0 %v444
        %1756 = vmatprep.subr.mxu0 %v442
        %1757 = vmatpush1.msra.mxu0 %v441
        %1758 = vmatprep.subr.mxu0 %v439
        %1759 = vmatpush1.msra.mxu0 %v438
        %1760 = vmatprep.subr.mxu0 %v436
        %1761 = vmatpush1.msra.mxu0 %v435
        %1762 = vmatprep.subr.mxu0 %v433
        %1763 = vmatpush1.msra.mxu0 %v432
        %1764 = vmatprep.subr.mxu0 %v430
        %1765 = vmatpush1.msra.mxu0 %v429
        %1766 = vmatprep.subr.mxu0 %v427
        %1767 = vmatpush1.msra.mxu0 %v426
        %1768 = vmatprep.subr.mxu0 %v424
        %1769 = vmatpush1.msra.mxu0 %v423
        %1770 = vmatprep.subr.mxu0 %v421
        %1771 = vmatpush1.msra.mxu0 %v420
        %1772 = vmatprep.subr.mxu0 %v418
        %1773 = vmatpush1.msra.mxu0 %v417
        %1774 = vmatprep.subr.mxu0 %v415
        %1775 = vmatpush1.msra.mxu0 %v414
        %1776 = vmatprep.subr.mxu0 %v412
        %1777 = vmatpush1.msra.mxu0 %v411
        %1778 = vmatprep.subr.mxu0 %v409
        %1779 = vmatpush1.msra.mxu0 %v408
        %1780 = vmatprep.subr.mxu0 %v406
        %1781 = vmatpush1.msra.mxu0 %v405
        %1782 = vmatprep.subr.mxu0 %v403
        %1783 = vmatpush1.msra.mxu0 %v402
        %1784 = vmatprep.subr.mxu0 %v400
        %1785 = vmatpush1.msra.mxu0 %v399
        %1786 = vmatprep.subr.mxu0 0.0
        %1787 = vmatpush2.msra.mxu0 0.0
        %1788 = vmatprep.subr.mxu0 0.0
        %1789 = vmatpush2.msra.mxu0 0.0
        %1790 = vmatprep.subr.mxu0 0.0
        %1791 = vmatpush2.msra.mxu0 0.0
        %1792 = vmatprep.subr.mxu0 0.0
        %1793 = vmatpush2.msra.mxu0 0.0
        %1794 = vmatprep.subr.mxu0 0.0
        %1795 = vmatpush2.msra.mxu0 0.0
        %1796 = vmatprep.subr.mxu0 0.0
        %1797 = vmatpush2.msra.mxu0 0.0
        %1798 = vmatprep.subr.mxu0 0.0
        %1799 = vmatpush2.msra.mxu0 0.0
        %1800 = vmatprep.subr.mxu0 0.0
        %1801 = vmatpush2.msra.mxu0 0.0
        %1802 = vmatprep.subr.mxu0 0.0
        %1803 = vmatpush2.msra.mxu0 0.0
        %1804 = vmatprep.subr.mxu0 0.0
        %1805 = vmatpush2.msra.mxu0 0.0
        %1806 = vmatprep.subr.mxu0 0.0
        %1807 = vmatpush2.msra.mxu0 0.0
        %1808 = vmatprep.subr.mxu0 0.0
        %1809 = vmatpush2.msra.mxu0 0.0
        %1810 = vmatprep.subr.mxu0 0.0
        %1811 = vmatpush2.msra.mxu0 0.0
        %1812 = vmatprep.subr.mxu0 0.0
        %1813 = vmatpush2.msra.mxu0 0.0
        %1814 = vmatprep.subr.mxu0 0.0
        %1815 = vmatpush2.msra.mxu0 0.0
        %1816 = vmatprep.subr.mxu0 0.0
        %1817 = vmatpush2.msra.mxu0 0.0
        %1818 = vmatprep.mubr.f32.mxu0 0.0
        %1819 = vmatmul.mubr.f32.gmra.mxu0 %v1747
        %v1820 = vpop.f32.mrf.mxu0
        %v1821 = vadd.f32 %v733, %v1820
        %v1822 = vpop.f32.mrf.mxu0
        %v1823 = vadd.f32 %v737, %v1822
        %1824 = vdwg.mxu0
        %1825 = vmatprep.subr.mxu0 0.0
        %1826 = vmatpush1.msra.mxu0 %v446
        %1827 = vmatprep.subr.mxu0 0.0
        %1828 = vmatpush1.msra.mxu0 %v443
        %1829 = vmatprep.subr.mxu0 0.0
        %1830 = vmatpush1.msra.mxu0 %v440
        %1831 = vmatprep.subr.mxu0 0.0
        %1832 = vmatpush1.msra.mxu0 %v437
        %1833 = vmatprep.subr.mxu0 0.0
        %1834 = vmatpush1.msra.mxu0 %v434
        %1835 = vmatprep.subr.mxu0 0.0
        %1836 = vmatpush1.msra.mxu0 %v431
        %1837 = vmatprep.subr.mxu0 0.0
        %1838 = vmatpush1.msra.mxu0 %v428
        %1839 = vmatprep.subr.mxu0 0.0
        %1840 = vmatpush1.msra.mxu0 %v425
        %1841 = vmatprep.subr.mxu0 0.0
        %1842 = vmatpush1.msra.mxu0 %v422
        %1843 = vmatprep.subr.mxu0 0.0
        %1844 = vmatpush1.msra.mxu0 %v419
        %1845 = vmatprep.subr.mxu0 0.0
        %1846 = vmatpush1.msra.mxu0 %v416
        %1847 = vmatprep.subr.mxu0 0.0
        %1848 = vmatpush1.msra.mxu0 %v413
        %1849 = vmatprep.subr.mxu0 0.0
        %1850 = vmatpush1.msra.mxu0 %v410
        %1851 = vmatprep.subr.mxu0 0.0
        %1852 = vmatpush1.msra.mxu0 %v407
        %1853 = vmatprep.subr.mxu0 0.0
        %1854 = vmatpush1.msra.mxu0 %v404
        %1855 = vmatprep.subr.mxu0 0.0
        %1856 = vmatpush1.msra.mxu0 %v401
        %1857 = vmatprep.subr.mxu0 0.0
        %1858 = vmatpush2.msra.mxu0 0.0
        %1859 = vmatprep.subr.mxu0 0.0
        %1860 = vmatpush2.msra.mxu0 0.0
        %1861 = vmatprep.subr.mxu0 0.0
        %1862 = vmatpush2.msra.mxu0 0.0
        %1863 = vmatprep.subr.mxu0 0.0
        %1864 = vmatpush2.msra.mxu0 0.0
        %1865 = vmatprep.subr.mxu0 0.0
        %1866 = vmatpush2.msra.mxu0 0.0
        %1867 = vmatprep.subr.mxu0 0.0
        %1868 = vmatpush2.msra.mxu0 0.0
        %1869 = vmatprep.subr.mxu0 0.0
        %1870 = vmatpush2.msra.mxu0 0.0
        %1871 = vmatprep.subr.mxu0 0.0
        %1872 = vmatpush2.msra.mxu0 0.0
        %1873 = vmatprep.subr.mxu0 0.0
        %1874 = vmatpush2.msra.mxu0 0.0
        %1875 = vmatprep.subr.mxu0 0.0
        %1876 = vmatpush2.msra.mxu0 0.0
        %1877 = vmatprep.subr.mxu0 0.0
        %1878 = vmatpush2.msra.mxu0 0.0
        %1879 = vmatprep.subr.mxu0 0.0
        %1880 = vmatpush2.msra.mxu0 0.0
        %1881 = vmatprep.subr.mxu0 0.0
        %1882 = vmatpush2.msra.mxu0 0.0
        %1883 = vmatprep.subr.mxu0 0.0
        %1884 = vmatpush2.msra.mxu0 0.0
        %1885 = vmatprep.subr.mxu0 0.0
        %1886 = vmatpush2.msra.mxu0 0.0
        %1887 = vmatprep.subr.mxu0 0.0
        %1888 = vmatpush2.msra.mxu0 0.0
        %1889 = vmatprep.mubr.f32.mxu0 0.0
        %1890 = vmatmul.mubr.f32.gmra.mxu0 %v1747
        %v1891 = vpop.f32.mrf.mxu0
        %v1892 = vadd.f32 %v741, %v1891
        %v1893 = vpop.f32.mrf.mxu0
        %1894 = vdwg.mxu0
        %v1895 = vadd.f32 %v614, %v1821
        %v1896 = vxor.u32 %v1895, 2147483648
        %v1897 = vmul.f32 %v1896, 1.442695
        %v1898 = vpow.pop %v1897
        %v1899 = vadd.f32 %v1898, 1.0
        %v1900 = vrcp.pop %v1899
        %v1901 = vmul.f32 1.0, %v1900
        %v1902 = vadd.f32 %v616, %v1823
        %v1903 = vxor.u32 %v1902, 2147483648
        %v1904 = vmul.f32 %v1903, 1.442695
        %v1905 = vpow.pop %v1904
        %v1906 = vadd.f32 %v1905, 1.0
        %v1907 = vrcp.pop %v1906
        %v1908 = vmul.f32 1.0, %v1907
        %v1909 = vmul.f32 %v1901, %v1892
        %v1910 = vadd.f32 %v721, %v1909
        %v1911 = vtanh.pop %v1910
        %v1912 = vsub.f32 1.0, %v1908
        %v1913 = vmul.f32 %v1912, %v1911
        %v1914 = vmul.f32 %v1908, %v1747
        %v1915 = vadd.f32 %v1913, %v1914
        %1916 = vset.pattern.permute.xlu0 6
        %1917 = vperm.xlu0 %1916, %v448
        %v1918 = vpop.permute.xlu0 %1917
        %v1920 = vmul.f32 %v1918, %v1915
        %v1921 = vadd.f32 %v1753, %v1920
        %1922 = vmatprep.subr.mxu0 %v445
        %1923 = vmatpush1.msra.mxu0 %v444
        %1924 = vmatprep.subr.mxu0 %v442
        %1925 = vmatpush1.msra.mxu0 %v441
        %1926 = vmatprep.subr.mxu0 %v439
        %1927 = vmatpush1.msra.mxu0 %v438
        %1928 = vmatprep.subr.mxu0 %v436
        %1929 = vmatpush1.msra.mxu0 %v435
        %1930 = vmatprep.subr.mxu0 %v433
        %1931 = vmatpush1.msra.mxu0 %v432
        %1932 = vmatprep.subr.mxu0 %v430
        %1933 = vmatpush1.msra.mxu0 %v429
        %1934 = vmatprep.subr.mxu0 %v427
        %1935 = vmatpush1.msra.mxu0 %v426
        %1936 = vmatprep.subr.mxu0 %v424
        %1937 = vmatpush1.msra.mxu0 %v423
        %1938 = vmatprep.subr.mxu0 %v421
        %1939 = vmatpush1.msra.mxu0 %v420
        %1940 = vmatprep.subr.mxu0 %v418
        %1941 = vmatpush1.msra.mxu0 %v417
        %1942 = vmatprep.subr.mxu0 %v415
        %1943 = vmatpush1.msra.mxu0 %v414
        %1944 = vmatprep.subr.mxu0 %v412
        %1945 = vmatpush1.msra.mxu0 %v411
        %1946 = vmatprep.subr.mxu0 %v409
        %1947 = vmatpush1.msra.mxu0 %v408
        %1948 = vmatprep.subr.mxu0 %v406
        %1949 = vmatpush1.msra.mxu0 %v405
        %1950 = vmatprep.subr.mxu0 %v403
        %1951 = vmatpush1.msra.mxu0 %v402
        %1952 = vmatprep.subr.mxu0 %v400
        %1953 = vmatpush1.msra.mxu0 %v399
        %1954 = vmatprep.subr.mxu0 0.0
        %1955 = vmatpush2.msra.mxu0 0.0
        %1956 = vmatprep.subr.mxu0 0.0
        %1957 = vmatpush2.msra.mxu0 0.0
        %1958 = vmatprep.subr.mxu0 0.0
        %1959 = vmatpush2.msra.mxu0 0.0
        %1960 = vmatprep.subr.mxu0 0.0
        %1961 = vmatpush2.msra.mxu0 0.0
        %1962 = vmatprep.subr.mxu0 0.0
        %1963 = vmatpush2.msra.mxu0 0.0
        %1964 = vmatprep.subr.mxu0 0.0
        %1965 = vmatpush2.msra.mxu0 0.0
        %1966 = vmatprep.subr.mxu0 0.0
        %1967 = vmatpush2.msra.mxu0 0.0
        %1968 = vmatprep.subr.mxu0 0.0
        %1969 = vmatpush2.msra.mxu0 0.0
        %1970 = vmatprep.subr.mxu0 0.0
        %1971 = vmatpush2.msra.mxu0 0.0
        %1972 = vmatprep.subr.mxu0 0.0
        %1973 = vmatpush2.msra.mxu0 0.0
        %1974 = vmatprep.subr.mxu0 0.0
        %1975 = vmatpush2.msra.mxu0 0.0
        %1976 = vmatprep.subr.mxu0 0.0
        %1977 = vmatpush2.msra.mxu0 0.0
        %1978 = vmatprep.subr.mxu0 0.0
        %1979 = vmatpush2.msra.mxu0 0.0
        %1980 = vmatprep.subr.mxu0 0.0
        %1981 = vmatpush2.msra.mxu0 0.0
        %1982 = vmatprep.subr.mxu0 0.0
        %1983 = vmatpush2.msra.mxu0 0.0
        %1984 = vmatprep.subr.mxu0 0.0
        %1985 = vmatpush2.msra.mxu0 0.0
        %1986 = vmatprep.mubr.f32.mxu0 0.0
        %1987 = vmatmul.mubr.f32.gmra.mxu0 %v1915
        %v1988 = vpop.f32.mrf.mxu0
        %v1989 = vadd.f32 %v733, %v1988
        %v1990 = vpop.f32.mrf.mxu0
        %v1991 = vadd.f32 %v737, %v1990
        %1992 = vdwg.mxu0
        %1993 = vmatprep.subr.mxu0 0.0
        %1994 = vmatpush1.msra.mxu0 %v446
        %1995 = vmatprep.subr.mxu0 0.0
        %1996 = vmatpush1.msra.mxu0 %v443
        %1997 = vmatprep.subr.mxu0 0.0
        %1998 = vmatpush1.msra.mxu0 %v440
        %1999 = vmatprep.subr.mxu0 0.0
        %2000 = vmatpush1.msra.mxu0 %v437
        %2001 = vmatprep.subr.mxu0 0.0
        %2002 = vmatpush1.msra.mxu0 %v434
        %2003 = vmatprep.subr.mxu0 0.0
        %2004 = vmatpush1.msra.mxu0 %v431
        %2005 = vmatprep.subr.mxu0 0.0
        %2006 = vmatpush1.msra.mxu0 %v428
        %2007 = vmatprep.subr.mxu0 0.0
        %2008 = vmatpush1.msra.mxu0 %v425
        %2009 = vmatprep.subr.mxu0 0.0
        %2010 = vmatpush1.msra.mxu0 %v422
        %2011 = vmatprep.subr.mxu0 0.0
        %2012 = vmatpush1.msra.mxu0 %v419
        %2013 = vmatprep.subr.mxu0 0.0
        %2014 = vmatpush1.msra.mxu0 %v416
        %2015 = vmatprep.subr.mxu0 0.0
        %2016 = vmatpush1.msra.mxu0 %v413
        %2017 = vmatprep.subr.mxu0 0.0
        %2018 = vmatpush1.msra.mxu0 %v410
        %2019 = vmatprep.subr.mxu0 0.0
        %2020 = vmatpush1.msra.mxu0 %v407
        %2021 = vmatprep.subr.mxu0 0.0
        %2022 = vmatpush1.msra.mxu0 %v404
        %2023 = vmatprep.subr.mxu0 0.0
        %2024 = vmatpush1.msra.mxu0 %v401
        %2025 = vmatprep.subr.mxu0 0.0
        %2026 = vmatpush2.msra.mxu0 0.0
        %2027 = vmatprep.subr.mxu0 0.0
        %2028 = vmatpush2.msra.mxu0 0.0
        %2029 = vmatprep.subr.mxu0 0.0
        %2030 = vmatpush2.msra.mxu0 0.0
        %2031 = vmatprep.subr.mxu0 0.0
        %2032 = vmatpush2.msra.mxu0 0.0
        %2033 = vmatprep.subr.mxu0 0.0
        %2034 = vmatpush2.msra.mxu0 0.0
        %2035 = vmatprep.subr.mxu0 0.0
        %2036 = vmatpush2.msra.mxu0 0.0
        %2037 = vmatprep.subr.mxu0 0.0
        %2038 = vmatpush2.msra.mxu0 0.0
        %2039 = vmatprep.subr.mxu0 0.0
        %2040 = vmatpush2.msra.mxu0 0.0
        %2041 = vmatprep.subr.mxu0 0.0
        %2042 = vmatpush2.msra.mxu0 0.0
        %2043 = vmatprep.subr.mxu0 0.0
        %2044 = vmatpush2.msra.mxu0 0.0
        %2045 = vmatprep.subr.mxu0 0.0
        %2046 = vmatpush2.msra.mxu0 0.0
        %2047 = vmatprep.subr.mxu0 0.0
        %2048 = vmatpush2.msra.mxu0 0.0
        %2049 = vmatprep.subr.mxu0 0.0
        %2050 = vmatpush2.msra.mxu0 0.0
        %2051 = vmatprep.subr.mxu0 0.0
        %2052 = vmatpush2.msra.mxu0 0.0
        %2053 = vmatprep.subr.mxu0 0.0
        %2054 = vmatpush2.msra.mxu0 0.0
        %2055 = vmatprep.subr.mxu0 0.0
        %2056 = vmatpush2.msra.mxu0 0.0
        %2057 = vmatprep.mubr.f32.mxu0 0.0
        %2058 = vmatmul.mubr.f32.gmra.mxu0 %v1915
        %v2059 = vpop.f32.mrf.mxu0
        %v2060 = vadd.f32 %v741, %v2059
        %v2061 = vpop.f32.mrf.mxu0
        %2062 = vdwg.mxu0
        %v2063 = vadd.f32 %v620, %v1989
        %v2064 = vxor.u32 %v2063, 2147483648
        %v2065 = vmul.f32 %v2064, 1.442695
        %v2066 = vpow.pop %v2065
        %v2067 = vadd.f32 %v2066, 1.0
        %v2068 = vrcp.pop %v2067
        %v2069 = vmul.f32 1.0, %v2068
        %v2070 = vadd.f32 %v622, %v1991
        %v2071 = vxor.u32 %v2070, 2147483648
        %v2072 = vmul.f32 %v2071, 1.442695
        %v2073 = vpow.pop %v2072
        %v2074 = vadd.f32 %v2073, 1.0
        %v2075 = vrcp.pop %v2074
        %v2076 = vmul.f32 1.0, %v2075
        %v2077 = vmul.f32 %v2069, %v2060
        %v2078 = vadd.f32 %v726, %v2077
        %v2079 = vtanh.pop %v2078
        %v2080 = vsub.f32 1.0, %v2076
        %v2081 = vmul.f32 %v2080, %v2079
        %v2082 = vmul.f32 %v2076, %v1915
        %v2083 = vadd.f32 %v2081, %v2082
        %2084 = vset.pattern.permute.xlu0 7
        %2085 = vperm.xlu0 %2084, %v448
        %v2086 = vpop.permute.xlu0 %2085
        %v2088 = vmul.f32 %v2086, %v2083
        %v2089 = vadd.f32 %v1921, %v2088
        %2090 = vst [vmem:[%s384] sm:$0xff] %v2089
        %s2091 = sand.u32 %s190, 1
        %s2092 = scalar_lea.sflag [#allocation4], %s2091
        %s2093 = sand.u32 %s190, 1
        %s2094 = smul.addr %s2093, 8
        %s2095 = scalar_lea.vmem [#allocation8], %s2094
        // Predicated region
        $region57: #{tpu_custom_call.1} parent=43 // pred_check
          %p2096 = pneg %p200
        $region58: #{tpu_custom_call.1} parent=43 // pred_check_branch
          %2098 = sbr.rel (%p2096) target = $region60
        $region59: #{tpu_custom_call.1} parent=43 // pred_region
          %s2100 = ssub.s32 128, 128
          %2101 = vsyncadd %s2092, %s2100
          %s2102 = smul.addr %s26, 128
          %s2103 = scalar_lea.hbm %s6, %s2102
          %s2105 = sshll.u32 %s2095, 4
          %s2106 = int_to_ptr.vmem [resolvable:$true] %s2105
          %2108 = dma.vmem_to_hbm [thread:$0]  %s2106, 128, %s2103, %s2092
        $region60: #{tpu_custom_call.1} parent=43 // pred_fallthru
          _
      $region44: #{tpu_custom_call.1} parent=5 // pred_fallthru
        _
      %p2109 = scmp.le.s32.totalorder 2, %s21
      // Predicated region
      $region61: #{tpu_custom_call.1} parent=5 // pred_check
        %p2110 = pneg %p2109
      $region62: #{tpu_custom_call.1} parent=5 // pred_check_branch
        %2112 = sbr.rel (%p2110) target = $region64
      $region63: #{tpu_custom_call.1} parent=5 // pred_region
        %s2113 = ssub.s32 %s21, 2
        // Predicated region
        $region65: #{tpu_custom_call.1} parent=63 // pred_check
          %p2114 = pneg %p206
        $region66: #{tpu_custom_call.1} parent=63 // pred_check_branch
          %2116 = sbr.rel (%p2114) target = $region68
        $region67: #{tpu_custom_call.1} parent=63 // pred_region
          %s2117 = sand.u32 %s191, 1
          %s2118 = scalar_lea.sflag [#allocation4], %s2117
          %s2119 = sand.u32 %s191, 1
          %s2120 = smul.addr %s2119, 8
          %s2121 = scalar_lea.vmem [#allocation8], %s2120
          %2122 = dma.done %s2118, 128
        $region68: #{tpu_custom_call.1} parent=63 // pred_fallthru
          _
      $region64: #{tpu_custom_call.1} parent=5 // pred_fallthru
        _
    $region6: #{tpu_custom_call.1} parent=1 // loop_footer
      %s25 = sadd.s32 1, %s21
    $region7: #{tpu_custom_call.1} parent=1 // loop_footer_branch
      %20 = sbr.rel target = $region3
    $region8: #{tpu_custom_call.1} parent=1 // loop_exit
      _
    %2123 = vsyncpa [#allocation3], 1
    %s2124 = scalar_lea.sflag [#allocation3], 1
    %2125 = vsyncpa %s2124, 1
    %2126 = vsyncpa [#allocation6], 1
    %s2127 = scalar_lea.sflag [#allocation6], 1
    %2128 = vsyncpa %s2127, 1
    %2129 = vsyncpa [#allocation4], 1
    %s2130 = scalar_lea.sflag [#allocation4], 1
    %2131 = vsyncpa %s2130, 1

</llo_original>
